<compile_context>
chip_gen: v5e
topology: v5e:2x2
jax: 0.10.0
libtpu: 0.0.40
codegen_flags: <defaults>
</compile_context>

<pallas_src>
import functools
import math

import jax
import jax.numpy as jnp
from jax import lax
from jax.experimental import pallas as pl
from jax.experimental.pallas import tpu as pltpu


def _rup(v, m):
    return ((v + m - 1) // m) * m


def _vmem_capacity_bytes():
    try:
        info = pltpu.get_tpu_info()
        cap = getattr(info, "vmem_capacity_bytes", None)
        if cap:
            return int(cap)
    except Exception:
        pass
    return 64 * 1024 * 1024        # conservative default (v7x per-core VMEM)


def _pick_gsub(groups, cs, cout_g, cap=32):
    """Smallest divisor of `groups` that makes the packed lane dims >= 128 (capped)."""
    gsub = 1
    for d in range(1, groups + 1):
        if groups % d:
            continue
        if d > cap:
            break
        gsub = d
        if d * cs >= 128 and d * cout_g >= 128:
            break
    return gsub


# -----------------------------------------------------------------------------
# Kernel 1: "convmap" — grouped map_k x map_k conv applied to the weight tensor
# (viewed as a num2d-channel KxK image), fused with the residual add:
#   out = weight_image + convmap(weight_image)
# Lane axis = convmap groups; no per-group broadcast copy of the weight image.
# -----------------------------------------------------------------------------
def _convmap_kernel(xpad_ref, m_ref, img_ref, out_ref, *, K, map_k, cpg):
    # xpad_ref: (cpg, Kp, Kp, TG)      spatially padded weight image
    # m_ref   : (cpg, cpg, mk, mk, TG) convmap filters [c_out, c_in, ky, kx, group-lane]
    # img_ref : (cpg, K, K, TG)        unpadded weight image (residual)
    # out_ref : (cpg, K, K, TG)
    x = xpad_ref[...].astype(jnp.float32)
    m = m_ref[...].astype(jnp.float32)
    acc = img_ref[...].astype(jnp.float32)
    for ci in range(cpg):
        for a in range(map_k):
            for b in range(map_k):
                acc = acc + (m[:, ci, a, b, :][:, None, None, :]
                             * x[ci, a:a + K, b:b + K, :][None])
    out_ref[...] = acc.astype(out_ref.dtype)


def repconv_make_kernel(weight, convmap_w, *, groups, map_k):
    """kernel = weight + convmap(weight.view(1, num2d, K, K)).view_as(weight)."""
    O, Ig, K, _ = weight.shape
    num2d = O * Ig
    cpg = groups                      # channels per convmap group
    Gmap = num2d // cpg               # convmap groups (lane axis)
    pm = map_k // 2
    Kp = K + 2 * pm

    # channel c = o*Ig + i ; convmap group gm = c // cpg
    img = weight.reshape(Gmap, cpg, K, K).transpose(1, 2, 3, 0)       # (cpg, K, K, Gmap)
    xpad = jnp.pad(img, ((0, 0), (pm, pm), (pm, pm), (0, 0)))         # (cpg, Kp, Kp, Gmap)
    m = convmap_w.reshape(Gmap, cpg, cpg, map_k, map_k).transpose(1, 2, 3, 4, 0)

    # Tile the lane axis for very large layers (bounds per-step VMEM on v7x).
    TG = Gmap
    if Gmap % 128 == 0:
        TG = min(Gmap, 2048)
        while TG > 128 and Gmap % TG:
            TG //= 2
        if Gmap % TG:
            TG = Gmap
    nG = Gmap // TG

    out = pl.pallas_call(
        functools.partial(_convmap_kernel, K=K, map_k=map_k, cpg=cpg),
        out_shape=jax.ShapeDtypeStruct((cpg, K, K, Gmap), weight.dtype),
        grid=(nG,),
        in_specs=[
            pl.BlockSpec((cpg, Kp, Kp, TG), lambda g: (0, 0, 0, g)),
            pl.BlockSpec((cpg, cpg, map_k, map_k, TG), lambda g: (0, 0, 0, 0, g)),
            pl.BlockSpec((cpg, K, K, TG), lambda g: (0, 0, 0, g)),
        ],
        out_specs=pl.BlockSpec((cpg, K, K, TG), lambda g: (0, 0, 0, g)),
        compiler_params=pltpu.CompilerParams(dimension_semantics=("parallel",)),
    )(xpad, m, img)
    return out.transpose(3, 0, 1, 2).reshape(O, Ig, K, K)


# -----------------------------------------------------------------------------
# Kernel 2: main grouped conv2d.  One (group-block, image, output-row-tile) per grid
# step.  In-kernel im2col of the K*K taps (static slices on a space-to-depth tile)
# feeds one bf16 MXU matmul per packed group, f32 accumulation, dense store.
# -----------------------------------------------------------------------------
def _conv_kernel(*refs, K, stride, TH, Wo, cin_g, cout_g, g_sub, hb):
    # refs (hb > 0): x_main, x_halo, w, out ; (hb == 0): x_main, w, out
    # x_main : (1, 1, TH, Wq, G_sub*s*s*cin_g)   space-to-depth input rows
    # x_halo : (1, 1, hb, Wq, G_sub*s*s*cin_g)   next hb rows (shared halo)
    # w      : (1, G_sub, K*K*cin_g, cout_g)     im2col weight
    # out    : (1, 1, TH*Wo, G_sub*cout_g)
    if hb > 0:
        x_ref, xh_ref, w_ref, o_ref = refs
    else:
        x_ref, w_ref, o_ref = refs
    s = stride
    x = x_ref[0, 0]                                            # (TH, Wq, Cs_blk)
    if hb > 0:
        x = jnp.concatenate([x, xh_ref[0, 0]], axis=0)         # (TH+hb, Wq, Cs_blk)
    outs = []
    for gs in range(g_sub):
        taps = []
        for i in range(K):
            for j in range(K):
                c0 = (gs * s * s + (i % s) * s + (j % s)) * cin_g
                taps.append(x[i // s:i // s + TH, j // s:j // s + Wo, c0:c0 + cin_g])
        p = taps[0] if len(taps) == 1 else jnp.concatenate(taps, axis=-1)
        p = p.reshape(TH * Wo, K * K * cin_g)                  # minor dim unchanged
        # TODO(synk): on v7x (MRB) per-tap matmuls with in-place accumulation would
        # avoid the lane-concat above; keep the single-matmul form for v5e/v6e (MRF).
        outs.append(jnp.dot(p, w_ref[0, gs], preferred_element_type=jnp.float32))
    res = outs[0] if g_sub == 1 else jnp.concatenate(outs, axis=-1)
    o_ref[0, 0] = res.astype(o_ref.dtype)


def repconv_forward(x, weight, convmap_w, *, stride, padding=None, groups=1,
                    map_k=3, tile_h=None, compute_dtype=jnp.bfloat16, out_dtype=None):
    """RepConv forward.  x: NCHW, weight: (O, I/g, K, K), convmap_w: (O*I/g, g, mk, mk).

    compute_dtype: MXU input dtype (bf16 default; pass jnp.float32 for exactness).
    out_dtype: HBM dtype of the result (defaults to x.dtype; bf16 halves writeback).
    """
    N, C, H, W = x.shape
    O, cin_g, K, _ = weight.shape
    if padding is None:
        padding = K // 2
    s = int(stride)
    cout_g = O // groups
    assert C == cin_g * groups and O == cout_g * groups
    out_dtype = x.dtype if out_dtype is None else out_dtype

    # Reparameterized kernel (tiny, weight-sized).
    kernel = repconv_make_kernel(weight, convmap_w, groups=groups, map_k=map_k)

    Ho = (H + 2 * padding - K) // s + 1
    Wo = (W + 2 * padding - K) // s + 1
    hb = (K - 1) // s                 # halo rows/cols (space-to-depth coordinates)
    Cs = s * s * cin_g                # per-group channels after space-to-depth
    Wq = Wo + hb

    # Group packing so the lane (minor) dims of the blocks are dense.
    G_sub = _pick_gsub(groups, Cs, cout_g)
    GB = groups // G_sub
    Cs_blk = G_sub * Cs
    out_minor = G_sub * cout_g

    # ---- per-step VMEM budget with (8,128) layout padding accounted ----
    cb = jnp.dtype(compute_dtype).itemsize
    ob = jnp.dtype(out_dtype).itemsize
    in_row = _rup(Wq, 8) * _rup(Cs_blk, 128) * cb                  # input block / output row
    patch_row = _rup(Wo, 8) * _rup(K * K * cin_g, 128) * cb        # im2col value / row
    acc_row = Wo * _rup(cout_g, 128) * 4                           # f32 matmul result / row
    out_row = Wo * _rup(out_minor, 128) * ob                       # output block / row
    per_row = 3 * in_row + patch_row + acc_row + 2 * out_row       # 2 in bufs + halo concat; 2 out bufs
    fixed = 2 * G_sub * _rup(K * K * cin_g, 8) * _rup(cout_g, 128) * cb   # weight (double-buffered)
    fixed += 2 * hb * in_row                                               # halo blocks

    vmem_cap = _vmem_capacity_bytes()
    if vmem_cap >= 96 * 1024 * 1024:          # v5e / v6e: 128 MiB VMEM per core
        ws_target, vmem_limit = 28 * 1024 * 1024, 96 * 1024 * 1024
    else:                                     # v7x: 64 MiB VMEM per core
        ws_target, vmem_limit = 10 * 1024 * 1024, 40 * 1024 * 1024
    vmem_limit = min(vmem_limit, max(vmem_cap - 16 * 1024 * 1024, 16 * 1024 * 1024))

    # ---- output-row tile TH (row tiles share the hb halo rows via the BlockSpec) ----
    if tile_h is not None:
        TH = max(1, int(tile_h))
    else:
        TH = max(8, (ws_target - fixed) // max(per_row, 1))
    TH = int(min(TH, Ho))
    hb_eff = hb if hb > 0 else 1
    row_align = 8 * hb_eff // math.gcd(8, hb_eff)        # lcm(8, hb)
    if TH < Ho:
        TH = max(row_align, (TH // row_align) * row_align)
    if TH >= Ho:
        TH = Ho if hb == 0 else _rup(Ho, hb)             # keep hb | TH for the halo index
        nH = 1
    else:
        nH = pl.cdiv(Ho, TH)
    Ho_pad = nH * TH
    Hq = Ho_pad + hb
    Hp_t, Wp_t = Hq * s, Wq * s

    # ---- layout glue: pad, group, space-to-depth, channels-last (one bf16 pass) ----
    # TODO(synk): fuse this pad/transpose (and the inverse NCHW transpose below) into the
    # kernel via allow_input_fusion / in-kernel gather to remove the remaining glue
    # round trips of the activation tensor.
    xc = x.astype(compute_dtype)
    pb = max(Hp_t - (H + padding), 0)
    pr = max(Wp_t - (W + padding), 0)
    xp = jnp.pad(xc, ((0, 0), (0, 0), (padding, pb), (padding, pr)))[:, :, :Hp_t, :Wp_t]
    xg = xp.reshape(N, GB, G_sub, cin_g, Hq, s, Wq, s)
    xg = xg.transpose(0, 1, 4, 6, 2, 5, 7, 3).reshape(N, GB, Hq, Wq, Cs_blk)

    # im2col weight: (GB, G_sub, K*K*cin_g, cout_g), row order [ky][kx][cin] matches taps.
    wg = kernel.reshape(GB, G_sub, cout_g, cin_g, K, K).transpose(0, 1, 4, 5, 3, 2)
    wg = wg.reshape(GB, G_sub, K * K * cin_g, cout_g).astype(compute_dtype)

    # ---- grid: largest axis first so megacore (v7x) always has a splittable axis ----
    axis_sizes = {"g": GB, "n": N, "t": nH}
    order = sorted(("g", "n", "t"), key=lambda k: -axis_sizes[k])
    pos = {k: i for i, k in enumerate(order)}
    grid = tuple(axis_sizes[k] for k in order)
    ratio = TH // hb if hb > 0 else 0

    def x_main_map(*idx):
        return (idx[pos["n"]], idx[pos["g"]], idx[pos["t"]], 0, 0)

    def x_halo_map(*idx):
        return (idx[pos["n"]], idx[pos["g"]], (idx[pos["t"]] + 1) * ratio, 0, 0)

    def w_map(*idx):
        return (idx[pos["g"]], 0, 0, 0)

    def o_map(*idx):
        return (idx[pos["n"]], idx[pos["g"]], idx[pos["t"]], 0)

    in_specs = [pl.BlockSpec((1, 1, TH, Wq, Cs_blk), x_main_map)]
    inputs = [xg]
    if hb > 0:
        in_specs.append(pl.BlockSpec((1, 1, hb, Wq, Cs_blk), x_halo_map))
        inputs.append(xg)
    # TODO(synk): pipeline_mode=pl.Buffered(1) on the weight spec would free one buffer.
    in_specs.append(pl.BlockSpec((1, G_sub, K * K * cin_g, cout_g), w_map))
    inputs.append(wg)

    flops = 2 * N * groups * Ho * Wo * cout_g * K * K * cin_g
    bytes_acc = int(xg.size) * cb + int(wg.size) * cb + N * GB * Ho_pad * Wo * out_minor * ob
    cost = pl.CostEstimate(flops=flops, transcendentals=0, bytes_accessed=bytes_acc)

    out = pl.pallas_call(
        functools.partial(_conv_kernel, K=K, stride=s, TH=TH, Wo=Wo,
                          cin_g=cin_g, cout_g=cout_g, g_sub=G_sub, hb=hb),
        out_shape=jax.ShapeDtypeStruct((N, GB, Ho_pad * Wo, out_minor), out_dtype),
        grid=grid,
        in_specs=in_specs,
        out_specs=pl.BlockSpec((1, 1, TH * Wo, out_minor), o_map),
        compiler_params=pltpu.CompilerParams(
            dimension_semantics=("parallel",) * len(grid),
            vmem_limit_bytes=int(vmem_limit)),
        cost_estimate=cost,
    )(*inputs)

    out = out.reshape(N, GB, Ho_pad, Wo, G_sub, cout_g)[:, :, :Ho]
    return out.transpose(0, 1, 4, 5, 2, 3).reshape(N, O, Ho, Wo)


# -----------------------------------------------------------------------------
# Pure-JAX reference (mirrors the PyTorch module exactly) for verification.
# -----------------------------------------------------------------------------
def repconv_reference(x, weight, convmap_w, *, stride, padding, groups, map_k):
    O, cin_g, K, _ = weight.shape
    num2d = O * cin_g
    Gmap = num2d // groups
    img = weight.reshape(1, num2d, K, K)
    mapped = lax.conv_general_dilated(
        img, convmap_w, window_strides=(1, 1),
        padding=[(map_k // 2, map_k // 2)] * 2,
        dimension_numbers=("NCHW", "OIHW", "NCHW"),
        feature_group_count=Gmap, precision=lax.Precision.HIGHEST)
    kernel = weight + mapped.reshape(O, cin_g, K, K)
    return lax.conv_general_dilated(
        x, kernel, window_strides=(stride, stride),
        padding=[(padding, padding)] * 2,
        dimension_numbers=("NCHW", "OIHW", "NCHW"),
        feature_group_count=groups, precision=lax.Precision.HIGHEST)


if __name__ == "__main__":
    key = jax.random.PRNGKey(0)

    configs = [
        dict(in_ch=4, out_ch=8, K=3, stride=1, groups=1, map_k=3, H=16, W=16, tile_h=None),
        dict(in_ch=4, out_ch=8, K=3, stride=2, groups=2, map_k=3, H=16, W=16, tile_h=None),
        # exercises output-row tiling: 2 tiles whose halo rows come via the halo BlockSpec
        dict(in_ch=4, out_ch=8, K=3, stride=1, groups=1, map_k=3, H=16, W=16, tile_h=8),
        # exercises the no-halo (hb == 0) path
        dict(in_ch=4, out_ch=8, K=1, stride=1, groups=1, map_k=1, H=16, W=16, tile_h=None),
    ]

    for idx, cfg in enumerate(configs):
        in_ch, out_ch = cfg["in_ch"], cfg["out_ch"]
        K, stride, groups, map_k = cfg["K"], cfg["stride"], cfg["groups"], cfg["map_k"]
        H, W = cfg["H"], cfg["W"]
        padding = K // 2
        num2d = out_ch * in_ch // groups            # number of 2D kernels
        Gmap = in_ch * out_ch // groups ** 2        # convmap groups

        k1, k2, k3 = jax.random.split(jax.random.fold_in(key, idx), 3)
        x = jax.random.normal(k1, (2, in_ch, H, W), jnp.float32)
        # NOTE: the PyTorch buffer `weight` is zero-initialized and convmap uses the
        # default Conv2d init; here both are random (same shapes) so the test is non-trivial.
        weight = 0.1 * jax.random.normal(
            k2, (out_ch, in_ch // groups, K, K), jnp.float32)
        convmap_w = 0.1 * jax.random.normal(
            k3, (num2d, num2d // Gmap, map_k, map_k), jnp.float32)

        fwd = jax.jit(functools.partial(
            repconv_forward, stride=stride, padding=padding, groups=groups,
            map_k=map_k, tile_h=cfg["tile_h"]))
        out = jax.block_until_ready(fwd(x, weight, convmap_w))

        ref = repconv_reference(x, weight, convmap_w, stride=stride,
                                padding=padding, groups=groups, map_k=map_k)
        assert out.shape == ref.shape, (out.shape, ref.shape)
        max_err = float(jnp.max(jnp.abs(out - ref)))
        scale = float(jnp.max(jnp.abs(ref))) + 1e-6
        # bf16 inputs to the main conv (f32 accumulation) -> relative tolerance vs f32 ref.
        assert max_err < 0.03 * scale + 1e-3, f"config {idx}: max abs err {max_err} (scale {scale})"

    print("KERNEL_OK")
</pallas_src>

<mosaic_0001>
module attributes {stable_mosaic.version = 11 : i64} {
  func.func @_convmap_kernel(%arg0: i32, %arg1: memref<1x5x5x32xf32, #tpu.memory_space<vmem>>, %arg2: memref<1x1x3x3x32xf32, #tpu.memory_space<vmem>>, %arg3: memref<1x3x3x32xf32, #tpu.memory_space<vmem>>, %arg4: memref<1x3x3x32xf32, #tpu.memory_space<vmem>>) attributes {dimension_semantics = [#tpu.dimension_semantics<parallel>], iteration_bounds = array<i64: 1>, scalar_prefetch = 0 : i64, scratch_operands = 0 : i64, tpu.core_type = #tpu.core_type<tc>, window_params = [{transform_indices = @transform_0, window_bounds = array<i64: 1, 5, 5, 32>}, {transform_indices = @transform_1, window_bounds = array<i64: 1, 1, 3, 3, 32>}, {transform_indices = @transform_2, window_bounds = array<i64: 1, 3, 3, 32>}, {transform_indices = @transform_3, window_bounds = array<i64: 1, 3, 3, 32>}]} {
    %c0 = arith.constant 0 : index
    %c0_0 = arith.constant 0 : index
    %c0_1 = arith.constant 0 : index
    %c0_2 = arith.constant 0 : index
    %0 = vector.load %arg1[%c0, %c0_0, %c0_1, %c0_2] : memref<1x5x5x32xf32, #tpu.memory_space<vmem>>, vector<1x5x5x32xf32>
    %c0_3 = arith.constant 0 : index
    %c0_4 = arith.constant 0 : index
    %c0_5 = arith.constant 0 : index
    %c0_6 = arith.constant 0 : index
    %c0_7 = arith.constant 0 : index
    %1 = vector.load %arg2[%c0_3, %c0_4, %c0_5, %c0_6, %c0_7] : memref<1x1x3x3x32xf32, #tpu.memory_space<vmem>>, vector<1x1x3x3x32xf32>
    %c0_8 = arith.constant 0 : index
    %c0_9 = arith.constant 0 : index
    %c0_10 = arith.constant 0 : index
    %c0_11 = arith.constant 0 : index
    %2 = vector.load %arg3[%c0_8, %c0_9, %c0_10, %c0_11] : memref<1x3x3x32xf32, #tpu.memory_space<vmem>>, vector<1x3x3x32xf32>
    %3 = vector.extract_strided_slice %1 {offsets = [0, 0, 0, 0, 0], sizes = [1, 1, 1, 1, 32], strides = [1, 1, 1, 1, 1]} : vector<1x1x3x3x32xf32> to vector<1x1x1x1x32xf32>
    %4 = vector.shape_cast %3 : vector<1x1x1x1x32xf32> to vector<1x32xf32>
    %5 = vector.shape_cast %4 : vector<1x32xf32> to vector<1x1x1x32xf32>
    %6 = vector.extract_strided_slice %0 {offsets = [0, 0, 0, 0], sizes = [1, 3, 3, 32], strides = [1, 1, 1, 1]} : vector<1x5x5x32xf32> to vector<1x3x3x32xf32>
    %7 = vector.shape_cast %6 : vector<1x3x3x32xf32> to vector<3x3x32xf32>
    %8 = vector.shape_cast %7 : vector<3x3x32xf32> to vector<1x3x3x32xf32>
    %9 = vector.broadcast %5 : vector<1x1x1x32xf32> to vector<1x3x3x32xf32>
    %10 = arith.mulf %9, %8 : vector<1x3x3x32xf32>
    %11 = arith.addf %2, %10 : vector<1x3x3x32xf32>
    %12 = vector.extract_strided_slice %1 {offsets = [0, 0, 0, 1, 0], sizes = [1, 1, 1, 1, 32], strides = [1, 1, 1, 1, 1]} : vector<1x1x3x3x32xf32> to vector<1x1x1x1x32xf32>
    %13 = vector.shape_cast %12 : vector<1x1x1x1x32xf32> to vector<1x32xf32>
    %14 = vector.shape_cast %13 : vector<1x32xf32> to vector<1x1x1x32xf32>
    %15 = vector.extract_strided_slice %0 {offsets = [0, 0, 1, 0], sizes = [1, 3, 3, 32], strides = [1, 1, 1, 1]} : vector<1x5x5x32xf32> to vector<1x3x3x32xf32>
    %16 = vector.shape_cast %15 : vector<1x3x3x32xf32> to vector<3x3x32xf32>
    %17 = vector.shape_cast %16 : vector<3x3x32xf32> to vector<1x3x3x32xf32>
    %18 = vector.broadcast %14 : vector<1x1x1x32xf32> to vector<1x3x3x32xf32>
    %19 = arith.mulf %18, %17 : vector<1x3x3x32xf32>
    %20 = arith.addf %11, %19 : vector<1x3x3x32xf32>
    %21 = vector.extract_strided_slice %1 {offsets = [0, 0, 0, 2, 0], sizes = [1, 1, 1, 1, 32], strides = [1, 1, 1, 1, 1]} : vector<1x1x3x3x32xf32> to vector<1x1x1x1x32xf32>
    %22 = vector.shape_cast %21 : vector<1x1x1x1x32xf32> to vector<1x32xf32>
    %23 = vector.shape_cast %22 : vector<1x32xf32> to vector<1x1x1x32xf32>
    %24 = vector.extract_strided_slice %0 {offsets = [0, 0, 2, 0], sizes = [1, 3, 3, 32], strides = [1, 1, 1, 1]} : vector<1x5x5x32xf32> to vector<1x3x3x32xf32>
    %25 = vector.shape_cast %24 : vector<1x3x3x32xf32> to vector<3x3x32xf32>
    %26 = vector.shape_cast %25 : vector<3x3x32xf32> to vector<1x3x3x32xf32>
    %27 = vector.broadcast %23 : vector<1x1x1x32xf32> to vector<1x3x3x32xf32>
    %28 = arith.mulf %27, %26 : vector<1x3x3x32xf32>
    %29 = arith.addf %20, %28 : vector<1x3x3x32xf32>
    %30 = vector.extract_strided_slice %1 {offsets = [0, 0, 1, 0, 0], sizes = [1, 1, 1, 1, 32], strides = [1, 1, 1, 1, 1]} : vector<1x1x3x3x32xf32> to vector<1x1x1x1x32xf32>
    %31 = vector.shape_cast %30 : vector<1x1x1x1x32xf32> to vector<1x32xf32>
    %32 = vector.shape_cast %31 : vector<1x32xf32> to vector<1x1x1x32xf32>
    %33 = vector.extract_strided_slice %0 {offsets = [0, 1, 0, 0], sizes = [1, 3, 3, 32], strides = [1, 1, 1, 1]} : vector<1x5x5x32xf32> to vector<1x3x3x32xf32>
    %34 = vector.shape_cast %33 : vector<1x3x3x32xf32> to vector<3x3x32xf32>
    %35 = vector.shape_cast %34 : vector<3x3x32xf32> to vector<1x3x3x32xf32>
    %36 = vector.broadcast %32 : vector<1x1x1x32xf32> to vector<1x3x3x32xf32>
    %37 = arith.mulf %36, %35 : vector<1x3x3x32xf32>
    %38 = arith.addf %29, %37 : vector<1x3x3x32xf32>
    %39 = vector.extract_strided_slice %1 {offsets = [0, 0, 1, 1, 0], sizes = [1, 1, 1, 1, 32], strides = [1, 1, 1, 1, 1]} : vector<1x1x3x3x32xf32> to vector<1x1x1x1x32xf32>
    %40 = vector.shape_cast %39 : vector<1x1x1x1x32xf32> to vector<1x32xf32>
    %41 = vector.shape_cast %40 : vector<1x32xf32> to vector<1x1x1x32xf32>
    %42 = vector.extract_strided_slice %0 {offsets = [0, 1, 1, 0], sizes = [1, 3, 3, 32], strides = [1, 1, 1, 1]} : vector<1x5x5x32xf32> to vector<1x3x3x32xf32>
    %43 = vector.shape_cast %42 : vector<1x3x3x32xf32> to vector<3x3x32xf32>
    %44 = vector.shape_cast %43 : vector<3x3x32xf32> to vector<1x3x3x32xf32>
    %45 = vector.broadcast %41 : vector<1x1x1x32xf32> to vector<1x3x3x32xf32>
    %46 = arith.mulf %45, %44 : vector<1x3x3x32xf32>
    %47 = arith.addf %38, %46 : vector<1x3x3x32xf32>
    %48 = vector.extract_strided_slice %1 {offsets = [0, 0, 1, 2, 0], sizes = [1, 1, 1, 1, 32], strides = [1, 1, 1, 1, 1]} : vector<1x1x3x3x32xf32> to vector<1x1x1x1x32xf32>
    %49 = vector.shape_cast %48 : vector<1x1x1x1x32xf32> to vector<1x32xf32>
    %50 = vector.shape_cast %49 : vector<1x32xf32> to vector<1x1x1x32xf32>
    %51 = vector.extract_strided_slice %0 {offsets = [0, 1, 2, 0], sizes = [1, 3, 3, 32], strides = [1, 1, 1, 1]} : vector<1x5x5x32xf32> to vector<1x3x3x32xf32>
    %52 = vector.shape_cast %51 : vector<1x3x3x32xf32> to vector<3x3x32xf32>
    %53 = vector.shape_cast %52 : vector<3x3x32xf32> to vector<1x3x3x32xf32>
    %54 = vector.broadcast %50 : vector<1x1x1x32xf32> to vector<1x3x3x32xf32>
    %55 = arith.mulf %54, %53 : vector<1x3x3x32xf32>
    %56 = arith.addf %47, %55 : vector<1x3x3x32xf32>
    %57 = vector.extract_strided_slice %1 {offsets = [0, 0, 2, 0, 0], sizes = [1, 1, 1, 1, 32], strides = [1, 1, 1, 1, 1]} : vector<1x1x3x3x32xf32> to vector<1x1x1x1x32xf32>
    %58 = vector.shape_cast %57 : vector<1x1x1x1x32xf32> to vector<1x32xf32>
    %59 = vector.shape_cast %58 : vector<1x32xf32> to vector<1x1x1x32xf32>
    %60 = vector.extract_strided_slice %0 {offsets = [0, 2, 0, 0], sizes = [1, 3, 3, 32], strides = [1, 1, 1, 1]} : vector<1x5x5x32xf32> to vector<1x3x3x32xf32>
    %61 = vector.shape_cast %60 : vector<1x3x3x32xf32> to vector<3x3x32xf32>
    %62 = vector.shape_cast %61 : vector<3x3x32xf32> to vector<1x3x3x32xf32>
    %63 = vector.broadcast %59 : vector<1x1x1x32xf32> to vector<1x3x3x32xf32>
    %64 = arith.mulf %63, %62 : vector<1x3x3x32xf32>
    %65 = arith.addf %56, %64 : vector<1x3x3x32xf32>
    %66 = vector.extract_strided_slice %1 {offsets = [0, 0, 2, 1, 0], sizes = [1, 1, 1, 1, 32], strides = [1, 1, 1, 1, 1]} : vector<1x1x3x3x32xf32> to vector<1x1x1x1x32xf32>
    %67 = vector.shape_cast %66 : vector<1x1x1x1x32xf32> to vector<1x32xf32>
    %68 = vector.shape_cast %67 : vector<1x32xf32> to vector<1x1x1x32xf32>
    %69 = vector.extract_strided_slice %0 {offsets = [0, 2, 1, 0], sizes = [1, 3, 3, 32], strides = [1, 1, 1, 1]} : vector<1x5x5x32xf32> to vector<1x3x3x32xf32>
    %70 = vector.shape_cast %69 : vector<1x3x3x32xf32> to vector<3x3x32xf32>
    %71 = vector.shape_cast %70 : vector<3x3x32xf32> to vector<1x3x3x32xf32>
    %72 = vector.broadcast %68 : vector<1x1x1x32xf32> to vector<1x3x3x32xf32>
    %73 = arith.mulf %72, %71 : vector<1x3x3x32xf32>
    %74 = arith.addf %65, %73 : vector<1x3x3x32xf32>
    %75 = vector.extract_strided_slice %1 {offsets = [0, 0, 2, 2, 0], sizes = [1, 1, 1, 1, 32], strides = [1, 1, 1, 1, 1]} : vector<1x1x3x3x32xf32> to vector<1x1x1x1x32xf32>
    %76 = vector.shape_cast %75 : vector<1x1x1x1x32xf32> to vector<1x32xf32>
    %77 = vector.shape_cast %76 : vector<1x32xf32> to vector<1x1x1x32xf32>
    %78 = vector.extract_strided_slice %0 {offsets = [0, 2, 2, 0], sizes = [1, 3, 3, 32], strides = [1, 1, 1, 1]} : vector<1x5x5x32xf32> to vector<1x3x3x32xf32>
    %79 = vector.shape_cast %78 : vector<1x3x3x32xf32> to vector<3x3x32xf32>
    %80 = vector.shape_cast %79 : vector<3x3x32xf32> to vector<1x3x3x32xf32>
    %81 = vector.broadcast %77 : vector<1x1x1x32xf32> to vector<1x3x3x32xf32>
    %82 = arith.mulf %81, %80 : vector<1x3x3x32xf32>
    %83 = arith.addf %74, %82 : vector<1x3x3x32xf32>
    %c0_12 = arith.constant 0 : index
    %c0_13 = arith.constant 0 : index
    %c0_14 = arith.constant 0 : index
    %c0_15 = arith.constant 0 : index
    %84 = vector.load %arg4[%c0_12, %c0_13, %c0_14, %c0_15] : memref<1x3x3x32xf32, #tpu.memory_space<vmem>>, vector<1x3x3x32xf32>
    tpu.vector_store %arg4[%c0_12, %c0_13, %c0_14, %c0_15], %83 {strides = array<i32>} : memref<1x3x3x32xf32, #tpu.memory_space<vmem>>, vector<1x3x3x32xf32>,
    return
  }
  func.func @transform_0(%arg0: i32) -> (i32, i32, i32, i32) {
    %c0_i32 = arith.constant 0 : i32
    %c0_i32_0 = arith.constant 0 : i32
    %c0_i32_1 = arith.constant 0 : i32
    %c0_i32_2 = arith.constant 0 : i32
    return %c0_i32, %c0_i32_0, %c0_i32_1, %arg0 : i32, i32, i32, i32
  }
  func.func @transform_1(%arg0: i32) -> (i32, i32, i32, i32, i32) {
    %c0_i32 = arith.constant 0 : i32
    %c0_i32_0 = arith.constant 0 : i32
    %c0_i32_1 = arith.constant 0 : i32
    %c0_i32_2 = arith.constant 0 : i32
    %c0_i32_3 = arith.constant 0 : i32
    return %c0_i32, %c0_i32_0, %c0_i32_1, %c0_i32_2, %arg0 : i32, i32, i32, i32, i32
  }
  func.func @transform_2(%arg0: i32) -> (i32, i32, i32, i32) {
    %c0_i32 = arith.constant 0 : i32
    %c0_i32_0 = arith.constant 0 : i32
    %c0_i32_1 = arith.constant 0 : i32
    %c0_i32_2 = arith.constant 0 : i32
    return %c0_i32, %c0_i32_0, %c0_i32_1, %arg0 : i32, i32, i32, i32
  }
  func.func @transform_3(%arg0: i32) -> (i32, i32, i32, i32) {
    %c0_i32 = arith.constant 0 : i32
    %c0_i32_0 = arith.constant 0 : i32
    %c0_i32_1 = arith.constant 0 : i32
    %c0_i32_2 = arith.constant 0 : i32
    return %c0_i32, %c0_i32_0, %c0_i32_1, %arg0 : i32, i32, i32, i32
  }
}

module attributes {stable_mosaic.version = 11 : i64} {
  func.func @_conv_kernel(%arg0: i32, %arg1: i32, %arg2: i32, %arg3: memref<1x1x16x18x4xbf16, #tpu.memory_space<vmem>>, %arg4: memref<1x1x2x18x4xbf16, #tpu.memory_space<vmem>>, %arg5: memref<1x1x36x8xbf16, #tpu.memory_space<vmem>>, %arg6: memref<1x1x256x8xf32, #tpu.memory_space<vmem>>) attributes {dimension_semantics = [#tpu.dimension_semantics<parallel>, #tpu.dimension_semantics<parallel>, #tpu.dimension_semantics<parallel>], iteration_bounds = array<i64: 2, 1, 1>, scalar_prefetch = 0 : i64, scratch_operands = 0 : i64, tpu.core_type = #tpu.core_type<tc>, window_params = [{transform_indices = @transform_0, window_bounds = array<i64: 1, 1, 16, 18, 4>}, {transform_indices = @transform_1, window_bounds = array<i64: 1, 1, 2, 18, 4>}, {transform_indices = @transform_2, window_bounds = array<i64: 1, 1, 36, 8>}, {transform_indices = @transform_3, window_bounds = array<i64: 1, 1, 256, 8>}]} {
    %c0 = arith.constant 0 : index
    %c0_0 = arith.constant 0 : index
    %c0_1 = arith.constant 0 : index
    %c0_2 = arith.constant 0 : index
    %c0_3 = arith.constant 0 : index
    %0 = vector.load %arg3[%c0, %c0_0, %c0_1, %c0_2, %c0_3] : memref<1x1x16x18x4xbf16, #tpu.memory_space<vmem>>, vector<1x1x16x18x4xbf16>
    %1 = vector.shape_cast %0 : vector<1x1x16x18x4xbf16> to vector<16x18x4xbf16>
    %c0_4 = arith.constant 0 : index
    %c0_5 = arith.constant 0 : index
    %c0_6 = arith.constant 0 : index
    %c0_7 = arith.constant 0 : index
    %c0_8 = arith.constant 0 : index
    %2 = vector.load %arg4[%c0_4, %c0_5, %c0_6, %c0_7, %c0_8] : memref<1x1x2x18x4xbf16, #tpu.memory_space<vmem>>, vector<1x1x2x18x4xbf16>
    %3 = vector.shape_cast %2 : vector<1x1x2x18x4xbf16> to vector<2x18x4xbf16>
    %4 = tpu.concatenate %1, %3 in 0 : vector<16x18x4xbf16>, vector<2x18x4xbf16> -> vector<18x18x4xbf16>
    %5 = vector.extract_strided_slice %4 {offsets = [0, 0, 0], sizes = [16, 16, 4], strides = [1, 1, 1]} : vector<18x18x4xbf16> to vector<16x16x4xbf16>
    %6 = vector.extract_strided_slice %4 {offsets = [0, 1, 0], sizes = [16, 16, 4], strides = [1, 1, 1]} : vector<18x18x4xbf16> to vector<16x16x4xbf16>
    %7 = vector.extract_strided_slice %4 {offsets = [0, 2, 0], sizes = [16, 16, 4], strides = [1, 1, 1]} : vector<18x18x4xbf16> to vector<16x16x4xbf16>
    %8 = vector.extract_strided_slice %4 {offsets = [1, 0, 0], sizes = [16, 16, 4], strides = [1, 1, 1]} : vector<18x18x4xbf16> to vector<16x16x4xbf16>
    %9 = vector.extract_strided_slice %4 {offsets = [1, 1, 0], sizes = [16, 16, 4], strides = [1, 1, 1]} : vector<18x18x4xbf16> to vector<16x16x4xbf16>
    %10 = vector.extract_strided_slice %4 {offsets = [1, 2, 0], sizes = [16, 16, 4], strides = [1, 1, 1]} : vector<18x18x4xbf16> to vector<16x16x4xbf16>
    %11 = vector.extract_strided_slice %4 {offsets = [2, 0, 0], sizes = [16, 16, 4], strides = [1, 1, 1]} : vector<18x18x4xbf16> to vector<16x16x4xbf16>
    %12 = vector.extract_strided_slice %4 {offsets = [2, 1, 0], sizes = [16, 16, 4], strides = [1, 1, 1]} : vector<18x18x4xbf16> to vector<16x16x4xbf16>
    %13 = vector.extract_strided_slice %4 {offsets = [2, 2, 0], sizes = [16, 16, 4], strides = [1, 1, 1]} : vector<18x18x4xbf16> to vector<16x16x4xbf16>
    %14 = tpu.concatenate %5, %6, %7, %8, %9, %10, %11, %12, %13 in 2 : vector<16x16x4xbf16>, vector<16x16x4xbf16>, vector<16x16x4xbf16>, vector<16x16x4xbf16>, vector<16x16x4xbf16>, vector<16x16x4xbf16>, vector<16x16x4xbf16>, vector<16x16x4xbf16>, vector<16x16x4xbf16> -> vector<16x16x36xbf16>
    %15 = vector.shape_cast %14 : vector<16x16x36xbf16> to vector<256x36xbf16>
    %c0_9 = arith.constant 0 : index
    %c0_10 = arith.constant 0 : index
    %c0_11 = arith.constant 0 : index
    %c0_12 = arith.constant 0 : index
    %16 = vector.load %arg5[%c0_9, %c0_10, %c0_11, %c0_12] : memref<1x1x36x8xbf16, #tpu.memory_space<vmem>>, vector<1x1x36x8xbf16>
    %17 = vector.shape_cast %16 : vector<1x1x36x8xbf16> to vector<36x8xbf16>
    %cst = arith.constant dense<0.000000e+00> : vector<256x8xf32>
    %18 = tpu.matmul %15, %17, %cst {dimension_numbers = #tpu.dot_dimension_numbers<[1], [0], [0], [1], [0, 0, 1, 1], [], []>} : vector<256x36xbf16>, vector<36x8xbf16>, vector<256x8xf32> -> vector<256x8xf32>
    %c0_13 = arith.constant 0 : index
    %c0_14 = arith.constant 0 : index
    %c0_15 = arith.constant 0 : index
    %c0_16 = arith.constant 0 : index
    %19 = vector.load %arg6[%c0_13, %c0_14, %c0_15, %c0_16] : memref<1x1x256x8xf32, #tpu.memory_space<vmem>>, vector<1x1x256x8xf32>
    %20 = vector.shape_cast %19 : vector<1x1x256x8xf32> to vector<256x8xf32>
    %21 = vector.shape_cast %18 : vector<256x8xf32> to vector<1x1x256x8xf32>
    tpu.vector_store %arg6[%c0_13, %c0_14, %c0_15, %c0_16], %21 {strides = array<i32>} : memref<1x1x256x8xf32, #tpu.memory_space<vmem>>, vector<1x1x256x8xf32>,
    return
  }
  func.func @transform_0(%arg0: i32, %arg1: i32, %arg2: i32) -> (i32, i32, i32, i32, i32) {
    %c0_i32 = arith.constant 0 : i32
    %c0_i32_0 = arith.constant 0 : i32
    %c0_i32_1 = arith.constant 0 : i32
    return %arg0, %arg1, %arg2, %c0_i32, %c0_i32_0 : i32, i32, i32, i32, i32
  }
  func.func @transform_1(%arg0: i32, %arg1: i32, %arg2: i32) -> (i32, i32, i32, i32, i32) {
    %c1_i32 = arith.constant 1 : i32
    %0 = arith.addi %arg2, %c1_i32 : i32
    %c8_i32 = arith.constant 8 : i32
    %1 = arith.muli %0, %c8_i32 : i32
    %c0_i32 = arith.constant 0 : i32
    %c0_i32_0 = arith.constant 0 : i32
    %c0_i32_1 = arith.constant 0 : i32
    return %arg0, %arg1, %1, %c0_i32, %c0_i32_0 : i32, i32, i32, i32, i32
  }
  func.func @transform_2(%arg0: i32, %arg1: i32, %arg2: i32) -> (i32, i32, i32, i32) {
    %c0_i32 = arith.constant 0 : i32
    %c0_i32_0 = arith.constant 0 : i32
    %c0_i32_1 = arith.constant 0 : i32
    %c0_i32_2 = arith.constant 0 : i32
    return %arg1, %c0_i32, %c0_i32_0, %c0_i32_1 : i32, i32, i32, i32
  }
  func.func @transform_3(%arg0: i32, %arg1: i32, %arg2: i32) -> (i32, i32, i32, i32) {
    %c0_i32 = arith.constant 0 : i32
    %c0_i32_0 = arith.constant 0 : i32
    return %arg0, %arg1, %arg2, %c0_i32 : i32, i32, i32, i32
  }
}

</mosaic_0001>

<llo_original>
// kernel: repconv_forward.2
$region0: #{repconv_forward.2}
  #allocation0 [shape = 'u32[]', space=smem, size = 0x4, offset = 0x4, fixed_abs, tag = 'smem constant byte address 0x4 - core index']
  #allocation1 [shape = 'u32[72,128]{1,0:T(1,128)}', space=vmem, size = 0x9000, scoped, tag = 'internal scratch']
  %s0 = inlined_call_operand.vmem [shape: f32[1,5,5,32], index: 0, kind: input, shape index: {}]
  %s1 = inlined_call_operand.vmem [shape: f32[1,1,3,3,32], index: 1, kind: input, shape index: {}]
  %s2 = inlined_call_operand.vmem [shape: f32[1,3,3,32], index: 2, kind: input, shape index: {}]
  %s3 = inlined_call_operand.vmem [shape: f32[1,3,3,32], index: 3, kind: output, shape index: {}]
  %s4 = sld [smem:[#allocation0]]
  $region22: #{repconv_forward.2} parent=0
    _
  %s6 = ssub.s32 1, %s4
  %s7 = scalar_select 0, %s6, %s4
  // Predicated region
  $region2: #{repconv_forward.2} parent=0 // pred_check
    _
  $region3: #{repconv_forward.2} parent=0 // pred_check_branch
    %9 = sbr.rel (0) target = $region5
  $region4: #{repconv_forward.2} parent=0 // pred_region
    _
  $region5: #{repconv_forward.2} parent=0 // pred_fallthru
    _
  // Predicated region
  $region6: #{repconv_forward.2} parent=0 // pred_check
    _
  $region7: #{repconv_forward.2} parent=0 // pred_check_branch
    %11 = sbr.rel (0) target = $region9
  $region8: #{repconv_forward.2} parent=0 // pred_region
    _
  $region9: #{repconv_forward.2} parent=0 // pred_fallthru
    _
  // Predicated region
  $region10: #{repconv_forward.2} parent=0 // pred_check
    _
  $region11: #{repconv_forward.2} parent=0 // pred_check_branch
    %13 = sbr.rel (0) target = $region13
  $region12: #{repconv_forward.2} parent=0 // pred_region
    _
  $region13: #{repconv_forward.2} parent=0 // pred_fallthru
    _
  %v14 = vld [vmem:[%s0] sm:$0x1f]
  %v15 = vld [vmem:[%s0 + $0x8] sm:$0x1f]
  %v16 = vld [vmem:[%s0 + $0x10] sm:$0x1f]
  %v17 = vld [vmem:[%s0 + $0x18] sm:$0x1f]
  %v18 = vld [vmem:[%s0 + $0x20] sm:$0x1f]
  %v19 = vld [vmem:[%s1] sm:$0x7]
  %v20 = vld [vmem:[%s1 + $0x4] sm:$0x7]
  %v21 = vld [vmem:[%s1 + $0x8] sm:$0x7]
  %v22 = vld [vmem:[%s2] sm:$0x7]
  %v23 = vld [vmem:[%s2 + $0x4] sm:$0x7]
  %v24 = vld [vmem:[%s2 + $0x8] sm:$0x7]
  %v25 = vperm.slane %v19, 0
  %v26 = vmul.f32 %v25, %v14
  %v27 = vmul.f32 %v25, %v15
  %v28 = vmul.f32 %v25, %v16
  %v29 = vadd.f32 %v22, %v26
  %v30 = vadd.f32 %v23, %v27
  %v31 = vadd.f32 %v24, %v28
  %v32 = vperm.slane %v19, 1
  %v33 = vmul.f32 %v32, %v14
  %v34 = vmul.f32 %v32, %v15
  %v35 = vmul.f32 %v32, %v16
  %v39 = vrot.slane %v33, 1
  %v40 = vrot.slane %v34, 1
  %v41 = vrot.slane %v35, 1
  %v45 = vadd.f32 %v29, %v39
  %v46 = vadd.f32 %v30, %v40
  %v47 = vadd.f32 %v31, %v41
  %v48 = vperm.slane %v19, 2
  %v49 = vmul.f32 %v48, %v14
  %v50 = vmul.f32 %v48, %v15
  %v51 = vmul.f32 %v48, %v16
  %v55 = vrot.slane %v49, 2
  %v56 = vrot.slane %v50, 2
  %v57 = vrot.slane %v51, 2
  %v61 = vadd.f32 %v45, %v55
  %v62 = vadd.f32 %v46, %v56
  %v63 = vadd.f32 %v47, %v57
  %v64 = vperm.slane %v20, 0
  %v65 = vmul.f32 %v64, %v15
  %v66 = vmul.f32 %v64, %v16
  %v67 = vmul.f32 %v64, %v17
  %v68 = vadd.f32 %v61, %v65
  %v69 = vadd.f32 %v62, %v66
  %v70 = vadd.f32 %v63, %v67
  %v71 = vperm.slane %v20, 1
  %v72 = vmul.f32 %v71, %v15
  %v73 = vmul.f32 %v71, %v16
  %v74 = vmul.f32 %v71, %v17
  %v78 = vrot.slane %v72, 1
  %v79 = vrot.slane %v73, 1
  %v80 = vrot.slane %v74, 1
  %v84 = vadd.f32 %v68, %v78
  %v85 = vadd.f32 %v69, %v79
  %v86 = vadd.f32 %v70, %v80
  %v87 = vperm.slane %v20, 2
  %v88 = vmul.f32 %v87, %v15
  %v89 = vmul.f32 %v87, %v16
  %v90 = vmul.f32 %v87, %v17
  %v94 = vrot.slane %v88, 2
  %v95 = vrot.slane %v89, 2
  %v96 = vrot.slane %v90, 2
  %v100 = vadd.f32 %v84, %v94
  %v101 = vadd.f32 %v85, %v95
  %v102 = vadd.f32 %v86, %v96
  %v103 = vperm.slane %v21, 0
  %v104 = vmul.f32 %v103, %v16
  %v105 = vmul.f32 %v103, %v17
  %v106 = vmul.f32 %v103, %v18
  %v107 = vadd.f32 %v100, %v104
  %v108 = vadd.f32 %v101, %v105
  %v109 = vadd.f32 %v102, %v106
  %v110 = vperm.slane %v21, 1
  %v111 = vmul.f32 %v110, %v16
  %v112 = vmul.f32 %v110, %v17
  %v113 = vmul.f32 %v110, %v18
  %v117 = vrot.slane %v111, 1
  %v118 = vrot.slane %v112, 1
  %v119 = vrot.slane %v113, 1
  %v123 = vadd.f32 %v107, %v117
  %v124 = vadd.f32 %v108, %v118
  %v125 = vadd.f32 %v109, %v119
  %v126 = vperm.slane %v21, 2
  %v127 = vmul.f32 %v126, %v16
  %v128 = vmul.f32 %v126, %v17
  %v129 = vmul.f32 %v126, %v18
  %v133 = vrot.slane %v127, 2
  %v134 = vrot.slane %v128, 2
  %v135 = vrot.slane %v129, 2
  %v139 = vadd.f32 %v123, %v133
  %v140 = vadd.f32 %v124, %v134
  %v141 = vadd.f32 %v125, %v135
  %vm142 = vcmask 256000
  %143 = vst.msk [vmem:[%s3] sm:$0x7] %vm142, %v139
  %144 = vst.msk [vmem:[%s3 + $0x4] sm:$0x7] %vm142, %v140
  %145 = vst.msk [vmem:[%s3 + $0x8] sm:$0x7] %vm142, %v141
  // Predicated region
  $region14: #{repconv_forward.2} parent=0 // pred_check
    _
  $region15: #{repconv_forward.2} parent=0 // pred_check_branch
    %147 = sbr.rel (0) target = $region17
  $region16: #{repconv_forward.2} parent=0 // pred_region
    _
  $region17: #{repconv_forward.2} parent=0 // pred_fallthru
    _
  // Predicated region
  $region18: #{repconv_forward.2} parent=0 // pred_check
    _
  $region19: #{repconv_forward.2} parent=0 // pred_check_branch
    %149 = sbr.rel (0) target = $region21
  $region20: #{repconv_forward.2} parent=0 // pred_region
    _
  $region21: #{repconv_forward.2} parent=0 // pred_fallthru
    _

// kernel: repconv_forward.3
$region0: #{repconv_forward.3}
  #allocation0 [shape = 'u32[]', space=smem, size = 0x4, offset = 0x4, fixed_abs, tag = 'smem constant byte address 0x4 - core index']
  #allocation1 [shape = 'u32[72,128]{1,0:T(1,128)}', space=vmem, size = 0x9000, scoped, tag = 'internal scratch']
  %s0 = inlined_call_operand.vmem [shape: bf16[2,1,18,18,4], index: 0, kind: input, shape index: {}, may-alias: {0,1}]
  %s1 = inlined_call_operand.vmem [shape: bf16[2,1,18,18,4], index: 1, kind: input, shape index: {}, may-alias: {0,1}]
  %s2 = inlined_call_operand.vmem [shape: bf16[1,1,36,8], index: 2, kind: input, shape index: {}]
  %s3 = inlined_call_operand.vmem [shape: f32[2,1,256,8], index: 3, kind: output, shape index: {}]
  %s4 = sld [smem:[#allocation0]]
  $region45: #{repconv_forward.3} parent=0
    _
  %s6 = ssub.s32 1, %s4
  %s7 = scalar_select 0, %s6, %s4
  loop: start=0, step=1, limit=4
  $region2: #{repconv_forward.3} parent=0 // loop_pre_header
    _
  $region3: #{repconv_forward.3} parent=0 // loop_header
    %s9 = sphi 0, %s13
    %p10 = scmp.ge.s32.totalorder %s9, 4
    %s16 = sphi 0, %s35
    %s17 = sphi 0, %s31
    %s18 = sphi 0, %s27
    %s19 = sphi 0, %s16
    %s20 = sphi 0, %s17
    %s21 = sphi 0, %s18
    %s22 = sphi 0, %s19
    %s23 = sphi 0, %s20
    %s24 = sphi 0, %s21
    %s42 = sphi 0, %s44
    %s45 = sphi 0, %s42
    %s46 = sphi 0, %s45
    %s62 = sphi 0, %s46
    %s76 = sphi 0, %s78
    %s79 = sphi 0, %s76
    %s80 = sphi 0, %s79
    %s96 = sphi 0, %s80
    %s102 = sphi 0, %s104
    %s105 = sphi 0, %s102
    %s106 = sphi 0, %s105
    %s122 = sphi 0, %s106
    %s132 = sphi 0, %s134
    %s135 = sphi 0, %s132
    %s136 = sphi 0, %s135
    %s152 = sphi 0, %s136
  $region4: #{repconv_forward.3} parent=0 // loop_header_branch
    %12 = sbr.rel (%p10) target = $region8
  $region5: #{repconv_forward.3} parent=0 // loop_body
    %s14 = ssub.s32 %s9, 1
    %s15 = ssub.s32 %s9, 2
    %s25 = sadd.s32 1, %s18
    %p26 = scmp.ge.s32.totalorder %s25, 1
    %s27 = scalar_select %p26, 0, %s25
    %s28 = sadd.s32 1, %s17
    %s29 = scalar_select %p26, %s28, %s17
    %p30 = scmp.ge.s32.totalorder %s29, 1
    %s31 = scalar_select %p30, 0, %s29
    %s32 = sadd.s32 1, %s16
    %s33 = scalar_select %p30, %s32, %s16
    %p34 = scmp.ge.s32.totalorder %s33, 2
    %s35 = scalar_select %p34, 0, %s33
    %s36 = ssub.s32 %s16, %s35
    %s37 = ssub.s32 %s17, %s31
    %s38 = sor.u32 %s36, %s37
    %s39 = ssub.s32 %s18, %s27
    %s40 = sor.u32 %s38, %s39
    %p41 = scmp.eq.s32.totalorder %s40, 0
    %s43 = sadd.s32 %s42, 1
    %s44 = scalar_select %p41, %s42, %s43
    %p47 = pneg %p41
    %p48 = scmp.eq.s32.totalorder %s9, 1
    %p49 = por %p47, %p48
    %p50 = scmp.ne.s32.totalorder %s42, %s45
    %p51 = scmp.eq.s32.totalorder %s9, 0
    %p52 = por %p50, %p51
    %p53 = scmp.ne.s32.totalorder %s42, %s45
    %p54 = scmp.eq.s32.totalorder %s14, 1
    %p55 = por %p53, %p54
    %p56 = scmp.ne.s32.totalorder %s45, %s46
    %p57 = scmp.eq.s32.totalorder %s14, 0
    %p58 = por %p56, %p57
    %p59 = scmp.ne.s32.totalorder %s45, %s46
    %p60 = scmp.eq.s32.totalorder %s15, 1
    %p61 = por %p59, %p60
    %p63 = scmp.ne.s32.totalorder %s46, %s62
    %p64 = scmp.eq.s32.totalorder %s15, 0
    %p65 = por %p63, %p64
    %s66 = sadd.s32 %s18, 1
    %s67 = smul.u32 %s66, 8
    %s68 = sadd.s32 %s27, 1
    %s69 = smul.u32 %s68, 8
    %s70 = ssub.s32 %s16, %s35
    %s71 = ssub.s32 %s17, %s31
    %s72 = sor.u32 %s70, %s71
    %s73 = ssub.s32 %s67, %s69
    %s74 = sor.u32 %s72, %s73
    %p75 = scmp.eq.s32.totalorder %s74, 0
    %s77 = sadd.s32 %s76, 1
    %s78 = scalar_select %p75, %s76, %s77
    %p81 = pneg %p75
    %p82 = scmp.eq.s32.totalorder %s9, 1
    %p83 = por %p81, %p82
    %p84 = scmp.ne.s32.totalorder %s76, %s79
    %p85 = scmp.eq.s32.totalorder %s9, 0
    %p86 = por %p84, %p85
    %p87 = scmp.ne.s32.totalorder %s76, %s79
    %p88 = scmp.eq.s32.totalorder %s14, 1
    %p89 = por %p87, %p88
    %p90 = scmp.ne.s32.totalorder %s79, %s80
    %p91 = scmp.eq.s32.totalorder %s14, 0
    %p92 = por %p90, %p91
    %p93 = scmp.ne.s32.totalorder %s79, %s80
    %p94 = scmp.eq.s32.totalorder %s15, 1
    %p95 = por %p93, %p94
    %p97 = scmp.ne.s32.totalorder %s80, %s96
    %p98 = scmp.eq.s32.totalorder %s15, 0
    %p99 = por %p97, %p98
    %s100 = ssub.s32 %s17, %s31
    %p101 = scmp.eq.s32.totalorder %s100, 0
    %s103 = sadd.s32 %s102, 1
    %s104 = scalar_select %p101, %s102, %s103
    %p107 = pneg %p101
    %p108 = scmp.eq.s32.totalorder %s9, 1
    %p109 = por %p107, %p108
    %p110 = scmp.ne.s32.totalorder %s102, %s105
    %p111 = scmp.eq.s32.totalorder %s9, 0
    %p112 = por %p110, %p111
    %p113 = scmp.ne.s32.totalorder %s102, %s105
    %p114 = scmp.eq.s32.totalorder %s14, 1
    %p115 = por %p113, %p114
    %p116 = scmp.ne.s32.totalorder %s105, %s106
    %p117 = scmp.eq.s32.totalorder %s14, 0
    %p118 = por %p116, %p117
    %p119 = scmp.ne.s32.totalorder %s105, %s106
    %p120 = scmp.eq.s32.totalorder %s15, 1
    %p121 = por %p119, %p120
    %p123 = scmp.ne.s32.totalorder %s106, %s122
    %p124 = scmp.eq.s32.totalorder %s15, 0
    %p125 = por %p123, %p124
    %s126 = ssub.s32 %s16, %s35
    %s127 = ssub.s32 %s17, %s31
    %s128 = sor.u32 %s126, %s127
    %s129 = ssub.s32 %s18, %s27
    %s130 = sor.u32 %s128, %s129
    %p131 = scmp.eq.s32.totalorder %s130, 0
    %s133 = sadd.s32 %s132, 1
    %s134 = scalar_select %p131, %s132, %s133
    %p137 = pneg %p131
    %p138 = scmp.eq.s32.totalorder %s9, 1
    %p139 = por %p137, %p138
    %p140 = scmp.ne.s32.totalorder %s132, %s135
    %p141 = scmp.eq.s32.totalorder %s9, 0
    %p142 = por %p140, %p141
    %p143 = scmp.ne.s32.totalorder %s132, %s135
    %p144 = scmp.eq.s32.totalorder %s14, 1
    %p145 = por %p143, %p144
    %p146 = scmp.ne.s32.totalorder %s135, %s136
    %p147 = scmp.eq.s32.totalorder %s14, 0
    %p148 = por %p146, %p147
    %p149 = scmp.ne.s32.totalorder %s135, %s136
    %p150 = scmp.eq.s32.totalorder %s15, 1
    %p151 = por %p149, %p150
    %p153 = scmp.ne.s32.totalorder %s136, %s152
    %p154 = scmp.eq.s32.totalorder %s15, 0
    %p155 = por %p153, %p154
    %p156 = scmp.le.s32.totalorder 1, %s9
    %p157 = scmp.lt.s32.totalorder %s9, 3
    %p158 = pnand %p156, %p157
    %p159 = pneg %p158
    // Predicated region
    $region9: #{repconv_forward.3} parent=5 // pred_check
      _
    $region10: #{repconv_forward.3} parent=5 // pred_check_branch
      %161 = sbr.rel (%p158) target = $region12
    $region11: #{repconv_forward.3} parent=5 // pred_region
      %s162 = ssub.s32 %s9, 1
      // Predicated region
      $region13: #{repconv_forward.3} parent=11 // pred_check
        %p163 = pneg %p118
      $region14: #{repconv_forward.3} parent=11 // pred_check_branch
        %165 = sbr.rel (%p163) target = $region16
      $region15: #{repconv_forward.3} parent=11 // pred_region
        %p166 = scmp.lt.s32.totalorder %s20, 0
        %s167 = scalar_select %p166, %s20, 0
        %s168 = smul.addr %s167, 5
        %s169 = smul.addr %s168, 4
        %s170 = scalar_lea.vmem %s2, %s169
      $region16: #{repconv_forward.3} parent=11 // pred_fallthru
        _
    $region12: #{repconv_forward.3} parent=5 // pred_fallthru
      _
    %p171 = scmp.lt.s32.totalorder %s9, 2
    // Predicated region
    $region17: #{repconv_forward.3} parent=5 // pred_check
      %p172 = pneg %p171
    $region18: #{repconv_forward.3} parent=5 // pred_check_branch
      %174 = sbr.rel (%p172) target = $region20
    $region19: #{repconv_forward.3} parent=5 // pred_region
      // Predicated region
      $region21: #{repconv_forward.3} parent=19 // pred_check
        %p175 = pneg %p52
      $region22: #{repconv_forward.3} parent=19 // pred_check_branch
        %177 = sbr.rel (%p175) target = $region24
      $region23: #{repconv_forward.3} parent=19 // pred_region
        %s178 = smul.u32 16, %s18
        %s179 = ssub.s32 18, %s178
        %p180 = scmp.lt.s32.totalorder %s179, 16
        %s181 = scalar_select %p180, %s179, 16
        %s182 = smul.u32 4, %s181
        %s183 = smul.u32 %s182, 3
        %p184 = scmp.lt.s32.totalorder %s16, 1
        %s185 = scalar_select %p184, %s16, 1
        %p186 = scmp.lt.s32.totalorder %s17, 0
        %s187 = scalar_select %p186, %s17, 0
        %p188 = scmp.lt.s32.totalorder %s178, 17
        %s189 = scalar_select %p188, %s178, 17
        %s190 = smul.addr %s189, 3
        %s191 = smul.addr %s187, 54
        %s192 = sadd.s32 %s190, %s191
        %s193 = smul.addr %s185, 54
        %s194 = sadd.s32 %s192, %s193
        %s195 = smul.addr %s194, 4
        %s196 = scalar_lea.vmem %s0, %s195
        %s197 = smul.u32 16, %s18
        %s198 = ssub.s32 18, %s197
        %p199 = scmp.lt.s32.totalorder %s198, 16
        %s200 = scalar_select %p199, %s198, 16
        %s201 = smul.u32 4, %s200
        %s202 = smul.u32 %s201, 3
      $region24: #{repconv_forward.3} parent=19 // pred_fallthru
        _
      // Predicated region
      $region25: #{repconv_forward.3} parent=19 // pred_check
        %p203 = pneg %p86
      $region26: #{repconv_forward.3} parent=19 // pred_check_branch
        %205 = sbr.rel (%p203) target = $region28
      $region27: #{repconv_forward.3} parent=19 // pred_region
        %s206 = sadd.s32 %s18, 1
        %s207 = smul.u32 %s206, 8
        %s208 = smul.u32 2, %s207
        %p209 = scmp.lt.s32.totalorder %s16, 1
        %s210 = scalar_select %p209, %s16, 1
        %p211 = scmp.lt.s32.totalorder %s17, 0
        %s212 = scalar_select %p211, %s17, 0
        %p213 = scmp.lt.s32.totalorder %s208, 17
        %s214 = scalar_select %p213, %s208, 17
        %s215 = smul.addr %s214, 3
        %s216 = smul.addr %s212, 54
        %s217 = sadd.s32 %s215, %s216
        %s218 = smul.addr %s210, 54
        %s219 = sadd.s32 %s217, %s218
        %s220 = smul.addr %s219, 4
        %s221 = scalar_lea.vmem %s1, %s220
        %s222 = sadd.s32 %s18, 1
        %s223 = smul.u32 %s222, 8
        %s224 = smul.u32 2, %s223
      $region28: #{repconv_forward.3} parent=19 // pred_fallthru
        _
    $region20: #{repconv_forward.3} parent=5 // pred_fallthru
      _
    %p225 = scmp.le.s32.totalorder 1, %s9
    %p226 = scmp.lt.s32.totalorder %s9, 3
    %p227 = pnand %p225, %p226
    %p228 = pneg %p227
    // Predicated region
    $region29: #{repconv_forward.3} parent=5 // pred_check
      _
    $region30: #{repconv_forward.3} parent=5 // pred_check_branch
      %230 = sbr.rel (%p227) target = $region32
    $region31: #{repconv_forward.3} parent=5 // pred_region
      %s231 = ssub.s32 %s9, 1
      %s232 = smul.u32 16, %s21
      %s233 = ssub.s32 18, %s232
      %p234 = scmp.lt.s32.totalorder %s233, 16
      %s235 = scalar_select %p234, %s233, 16
      %s236 = smul.u32 4, %s235
      %s237 = smul.u32 %s236, 3
      %p238 = scmp.lt.s32.totalorder %s19, 1
      %s239 = scalar_select %p238, %s19, 1
      %p240 = scmp.lt.s32.totalorder %s20, 0
      %s241 = scalar_select %p240, %s20, 0
      %p242 = scmp.lt.s32.totalorder %s232, 17
      %s243 = scalar_select %p242, %s232, 17
      %s244 = smul.addr %s243, 3
      %s245 = smul.addr %s241, 54
      %s246 = sadd.s32 %s244, %s245
      %s247 = smul.addr %s239, 54
      %s248 = sadd.s32 %s246, %s247
      %s249 = smul.addr %s248, 4
      %s250 = scalar_lea.vmem %s0, %s249
      %p251 = pneg %p58
      %p252 = pneg %p55
      %s253 = sadd.s32 %s21, 1
      %s254 = smul.u32 %s253, 8
      %s255 = smul.u32 2, %s254
      %p256 = scmp.lt.s32.totalorder %s19, 1
      %s257 = scalar_select %p256, %s19, 1
      %p258 = scmp.lt.s32.totalorder %s20, 0
      %s259 = scalar_select %p258, %s20, 0
      %p260 = scmp.lt.s32.totalorder %s255, 17
      %s261 = scalar_select %p260, %s255, 17
      %s262 = smul.addr %s261, 3
      %s263 = smul.addr %s259, 54
      %s264 = sadd.s32 %s262, %s263
      %s265 = smul.addr %s257, 54
      %s266 = sadd.s32 %s264, %s265
      %s267 = smul.addr %s266, 4
      %s268 = scalar_lea.vmem %s1, %s267
      %p269 = pneg %p92
      %p270 = pneg %p89
      %p271 = scmp.lt.s32.totalorder %s20, 0
      %s272 = scalar_select %p271, %s20, 0
      %s273 = smul.addr %s272, 5
      %s274 = smul.addr %s273, 4
      %s275 = scalar_lea.vmem %s2, %s274
      %p276 = pneg %p118
      %p277 = pneg %p115
      %p278 = pneg %p148
      %p279 = pneg %p145
      %s280 = smul.u32 32, %s21
      %p281 = scmp.lt.s32.totalorder %s19, 1
      %s282 = scalar_select %p281, %s19, 1
      %p283 = scmp.lt.s32.totalorder %s20, 0
      %s284 = scalar_select %p283, %s20, 0
      %p285 = scmp.lt.s32.totalorder %s280, 31
      %s286 = scalar_select %p285, %s280, 31
      %s287 = smul.addr %s284, 32
      %s288 = sadd.s32 %s286, %s287
      %s289 = smul.addr %s282, 32
      %s290 = sadd.s32 %s288, %s289
      %s291 = smul.addr %s290, 8
      %s292 = scalar_lea.vmem %s3, %s291
      %s293 = smul.u32 16, %s21
      %s294 = ssub.s32 18, %s293
      %p295 = scmp.lt.s32.totalorder %s294, 16
      %s296 = scalar_select %p295, %s294, 16
      %s297 = smul.u32 4, %s296
      %s298 = smul.u32 %s297, 3
      %p299 = scmp.lt.s32.totalorder %s19, 1
      %s300 = scalar_select %p299, %s19, 1
      %p301 = scmp.lt.s32.totalorder %s20, 0
      %s302 = scalar_select %p301, %s20, 0
      %p303 = scmp.lt.s32.totalorder %s293, 17
      %s304 = scalar_select %p303, %s293, 17
      %s305 = smul.addr %s304, 3
      %s306 = smul.addr %s302, 54
      %s307 = sadd.s32 %s305, %s306
      %s308 = smul.addr %s300, 54
      %s309 = sadd.s32 %s307, %s308
      %s310 = smul.addr %s309, 4
      %s311 = scalar_lea.vmem %s0, %s310
      %s312 = smul.u32 16, %s21
      %s313 = ssub.s32 18, %s312
      %p314 = scmp.lt.s32.totalorder %s313, 16
      %s315 = scalar_select %p314, %s313, 16
      %s316 = smul.u32 4, %s315
      %s317 = smul.u32 %s316, 3
      %s318 = sadd.s32 %s21, 1
      %s319 = smul.u32 %s318, 8
      %s320 = smul.u32 2, %s319
      %p321 = scmp.lt.s32.totalorder %s19, 1
      %s322 = scalar_select %p321, %s19, 1
      %p323 = scmp.lt.s32.totalorder %s20, 0
      %s324 = scalar_select %p323, %s20, 0
      %p325 = scmp.lt.s32.totalorder %s320, 17
      %s326 = scalar_select %p325, %s320, 17
      %s327 = smul.addr %s326, 3
      %s328 = smul.addr %s324, 54
      %s329 = sadd.s32 %s327, %s328
      %s330 = smul.addr %s322, 54
      %s331 = sadd.s32 %s329, %s330
      %s332 = smul.addr %s331, 4
      %s333 = scalar_lea.vmem %s1, %s332
      %s334 = sadd.s32 %s21, 1
      %s335 = smul.u32 %s334, 8
      %s336 = smul.u32 2, %s335
      %p337 = scmp.lt.s32.totalorder %s20, 0
      %s338 = scalar_select %p337, %s20, 0
      %s339 = smul.addr %s338, 5
      %s340 = smul.addr %s339, 4
      %s341 = scalar_lea.vmem %s2, %s340
      %s342 = smul.u32 32, %s21
      %p343 = scmp.lt.s32.totalorder %s19, 1
      %s344 = scalar_select %p343, %s19, 1
      %p345 = scmp.lt.s32.totalorder %s20, 0
      %s346 = scalar_select %p345, %s20, 0
      %p347 = scmp.lt.s32.totalorder %s342, 31
      %s348 = scalar_select %p347, %s342, 31
      %s349 = smul.addr %s346, 32
      %s350 = sadd.s32 %s348, %s349
      %s351 = smul.addr %s344, 32
      %s352 = sadd.s32 %s350, %s351
      %s353 = smul.addr %s352, 8
      %s354 = scalar_lea.vmem %s3, %s353
      %s355 = smul.u32 32, %s21
      %v357 = vld [vmem:[%s311] sm:$0xf]
      %v358 = vld [vmem:[%s311 + $0x4] sm:$0xf]
      %v359 = vld [vmem:[%s311 + $0x8] sm:$0x1]
      %v360 = vld [vmem:[%s311 + $0xc] sm:$0xf]
      %v361 = vld [vmem:[%s311 + $0x10] sm:$0xf]
      %v362 = vld [vmem:[%s311 + $0x14] sm:$0x1]
      %v363 = vld [vmem:[%s311 + $0x18] sm:$0xf]
      %v364 = vld [vmem:[%s311 + $0x1c] sm:$0xf]
      %v365 = vld [vmem:[%s311 + $0x20] sm:$0x1]
      %v366 = vld [vmem:[%s311 + $0x24] sm:$0xf]
      %v367 = vld [vmem:[%s311 + $0x28] sm:$0xf]
      %v368 = vld [vmem:[%s311 + $0x2c] sm:$0x1]
      %v369 = vld [vmem:[%s311 + $0x30] sm:$0xf]
      %v370 = vld [vmem:[%s311 + $0x34] sm:$0xf]
      %v371 = vld [vmem:[%s311 + $0x38] sm:$0x1]
      %v372 = vld [vmem:[%s311 + $0x3c] sm:$0xf]
      %v373 = vld [vmem:[%s311 + $0x40] sm:$0xf]
      %v374 = vld [vmem:[%s311 + $0x44] sm:$0x1]
      %v375 = vld [vmem:[%s311 + $0x48] sm:$0xf]
      %v376 = vld [vmem:[%s311 + $0x4c] sm:$0xf]
      %v377 = vld [vmem:[%s311 + $0x50] sm:$0x1]
      %v378 = vld [vmem:[%s311 + $0x54] sm:$0xf]
      %v379 = vld [vmem:[%s311 + $0x58] sm:$0xf]
      %v380 = vld [vmem:[%s311 + $0x5c] sm:$0x1]
      %v381 = vld [vmem:[%s311 + $0x60] sm:$0xf]
      %v382 = vld [vmem:[%s311 + $0x64] sm:$0xf]
      %v383 = vld [vmem:[%s311 + $0x68] sm:$0x1]
      %v384 = vld [vmem:[%s311 + $0x6c] sm:$0xf]
      %v385 = vld [vmem:[%s311 + $0x70] sm:$0xf]
      %v386 = vld [vmem:[%s311 + $0x74] sm:$0x1]
      %v387 = vld [vmem:[%s311 + $0x78] sm:$0xf]
      %v388 = vld [vmem:[%s311 + $0x7c] sm:$0xf]
      %v389 = vld [vmem:[%s311 + $0x80] sm:$0x1]
      %v390 = vld [vmem:[%s311 + $0x84] sm:$0xf]
      %v391 = vld [vmem:[%s311 + $0x88] sm:$0xf]
      %v392 = vld [vmem:[%s311 + $0x8c] sm:$0x1]
      %v393 = vld [vmem:[%s311 + $0x90] sm:$0xf]
      %v394 = vld [vmem:[%s311 + $0x94] sm:$0xf]
      %v395 = vld [vmem:[%s311 + $0x98] sm:$0x1]
      %v396 = vld [vmem:[%s311 + $0x9c] sm:$0xf]
      %v397 = vld [vmem:[%s311 + $0xa0] sm:$0xf]
      %v398 = vld [vmem:[%s311 + $0xa4] sm:$0x1]
      %v399 = vld [vmem:[%s311 + $0xa8] sm:$0xf]
      %v400 = vld [vmem:[%s311 + $0xac] sm:$0xf]
      %v401 = vld [vmem:[%s311 + $0xb0] sm:$0x1]
      %v402 = vld [vmem:[%s311 + $0xb4] sm:$0xf]
      %v403 = vld [vmem:[%s311 + $0xb8] sm:$0xf]
      %v404 = vld [vmem:[%s311 + $0xbc] sm:$0x1]
      %v405 = vld [vmem:[%s333] sm:$0xf]
      %v406 = vld [vmem:[%s333 + $0x4] sm:$0xf]
      %v407 = vld [vmem:[%s333 + $0x8] sm:$0x1]
      %v408 = vld [vmem:[%s333 + $0xc] sm:$0xf]
      %v409 = vld [vmem:[%s333 + $0x10] sm:$0xf]
      %v410 = vld [vmem:[%s333 + $0x14] sm:$0x1]
      %v443 = vunpack.c.l.b16 %v357
      %v444 = vunpack.c.l.b16 %v358
      %v445 = vunpack.c.l.b16 %v360
      %v446 = vunpack.c.l.b16 %v361
      %v447 = vunpack.c.l.b16 %v363
      %v448 = vunpack.c.l.b16 %v364
      %v449 = vunpack.c.l.b16 %v366
      %v450 = vunpack.c.l.b16 %v367
      %v451 = vunpack.c.l.b16 %v369
      %v452 = vunpack.c.l.b16 %v370
      %v453 = vunpack.c.l.b16 %v372
      %v454 = vunpack.c.l.b16 %v373
      %v455 = vunpack.c.l.b16 %v375
      %v456 = vunpack.c.l.b16 %v376
      %v457 = vunpack.c.l.b16 %v378
      %v458 = vunpack.c.l.b16 %v379
      %v459 = vunpack.c.l.b16 %v381
      %v460 = vunpack.c.l.b16 %v382
      %v461 = vunpack.c.l.b16 %v384
      %v462 = vunpack.c.l.b16 %v385
      %v463 = vunpack.c.l.b16 %v387
      %v464 = vunpack.c.l.b16 %v388
      %v465 = vunpack.c.l.b16 %v390
      %v466 = vunpack.c.l.b16 %v391
      %v467 = vunpack.c.l.b16 %v393
      %v468 = vunpack.c.l.b16 %v394
      %v469 = vunpack.c.l.b16 %v396
      %v470 = vunpack.c.l.b16 %v397
      %v471 = vunpack.c.l.b16 %v399
      %v472 = vunpack.c.l.b16 %v400
      %v473 = vunpack.c.l.b16 %v402
      %v474 = vunpack.c.l.b16 %v403
      %v475 = vpack.c.b16 %v444, %v443
      %v476 = vpack.c.b16 %v446, %v445
      %v477 = vpack.c.b16 %v448, %v447
      %v478 = vpack.c.b16 %v450, %v449
      %v479 = vpack.c.b16 %v452, %v451
      %v480 = vpack.c.b16 %v454, %v453
      %v481 = vpack.c.b16 %v456, %v455
      %v482 = vpack.c.b16 %v458, %v457
      %v483 = vpack.c.b16 %v460, %v459
      %v484 = vpack.c.b16 %v462, %v461
      %v485 = vpack.c.b16 %v464, %v463
      %v486 = vpack.c.b16 %v466, %v465
      %v487 = vpack.c.b16 %v468, %v467
      %v488 = vpack.c.b16 %v470, %v469
      %v489 = vpack.c.b16 %v472, %v471
      %v490 = vpack.c.b16 %v474, %v473
      %v507 = vunpack.c.l.b16 %v359
      %v508 = vunpack.c.l.b16 %v362
      %v509 = vunpack.c.l.b16 %v365
      %v510 = vunpack.c.l.b16 %v368
      %v511 = vunpack.c.l.b16 %v371
      %v512 = vunpack.c.l.b16 %v374
      %v513 = vunpack.c.l.b16 %v377
      %v514 = vunpack.c.l.b16 %v380
      %v515 = vunpack.c.l.b16 %v383
      %v516 = vunpack.c.l.b16 %v386
      %v517 = vunpack.c.l.b16 %v389
      %v518 = vunpack.c.l.b16 %v392
      %v519 = vunpack.c.l.b16 %v395
      %v520 = vunpack.c.l.b16 %v398
      %v521 = vunpack.c.l.b16 %v401
      %v522 = vunpack.c.l.b16 %v404
      %v523 = vpack.c.b16 %v507, %v507
      %v524 = vpack.c.b16 %v508, %v508
      %v525 = vpack.c.b16 %v509, %v509
      %v526 = vpack.c.b16 %v510, %v510
      %v527 = vpack.c.b16 %v511, %v511
      %v528 = vpack.c.b16 %v512, %v512
      %v529 = vpack.c.b16 %v513, %v513
      %v530 = vpack.c.b16 %v514, %v514
      %v531 = vpack.c.b16 %v515, %v515
      %v532 = vpack.c.b16 %v516, %v516
      %v533 = vpack.c.b16 %v517, %v517
      %v534 = vpack.c.b16 %v518, %v518
      %v535 = vpack.c.b16 %v519, %v519
      %v536 = vpack.c.b16 %v520, %v520
      %v537 = vpack.c.b16 %v521, %v521
      %v538 = vpack.c.b16 %v522, %v522
      %vm539 = vsmask.f32 7424
      %v541 = vshrl.u32 %v475, 16
      %v543 = vshll.u32 %v475, 16
      %v545 = vrot.slane %v543, 1
      %v546 = vor.u32 %v541, %v545
      %v548 = vshll.u32 %v523, 16
      %v550 = vrot.slane %v548, 1
      %v551 = vsel %vm539, %v546, %v550
      %v553 = vshrl.u32 %v476, 16
      %v555 = vshll.u32 %v476, 16
      %v557 = vrot.slane %v555, 1
      %v558 = vor.u32 %v553, %v557
      %v560 = vshll.u32 %v524, 16
      %v562 = vrot.slane %v560, 1
      %v563 = vsel %vm539, %v558, %v562
      %v565 = vshrl.u32 %v477, 16
      %v567 = vshll.u32 %v477, 16
      %v569 = vrot.slane %v567, 1
      %v570 = vor.u32 %v565, %v569
      %v572 = vshll.u32 %v525, 16
      %v574 = vrot.slane %v572, 1
      %v575 = vsel %vm539, %v570, %v574
      %v577 = vshrl.u32 %v478, 16
      %v579 = vshll.u32 %v478, 16
      %v581 = vrot.slane %v579, 1
      %v582 = vor.u32 %v577, %v581
      %v584 = vshll.u32 %v526, 16
      %v586 = vrot.slane %v584, 1
      %v587 = vsel %vm539, %v582, %v586
      %v589 = vshrl.u32 %v479, 16
      %v591 = vshll.u32 %v479, 16
      %v593 = vrot.slane %v591, 1
      %v594 = vor.u32 %v589, %v593
      %v596 = vshll.u32 %v527, 16
      %v598 = vrot.slane %v596, 1
      %v599 = vsel %vm539, %v594, %v598
      %v601 = vshrl.u32 %v480, 16
      %v603 = vshll.u32 %v480, 16
      %v605 = vrot.slane %v603, 1
      %v606 = vor.u32 %v601, %v605
      %v608 = vshll.u32 %v528, 16
      %v610 = vrot.slane %v608, 1
      %v611 = vsel %vm539, %v606, %v610
      %v613 = vshrl.u32 %v481, 16
      %v615 = vshll.u32 %v481, 16
      %v617 = vrot.slane %v615, 1
      %v618 = vor.u32 %v613, %v617
      %v620 = vshll.u32 %v529, 16
      %v622 = vrot.slane %v620, 1
      %v623 = vsel %vm539, %v618, %v622
      %v625 = vshrl.u32 %v482, 16
      %v627 = vshll.u32 %v482, 16
      %v629 = vrot.slane %v627, 1
      %v630 = vor.u32 %v625, %v629
      %v632 = vshll.u32 %v530, 16
      %v634 = vrot.slane %v632, 1
      %v635 = vsel %vm539, %v630, %v634
      %v637 = vshrl.u32 %v483, 16
      %v639 = vshll.u32 %v483, 16
      %v641 = vrot.slane %v639, 1
      %v642 = vor.u32 %v637, %v641
      %v644 = vshll.u32 %v531, 16
      %v646 = vrot.slane %v644, 1
      %v647 = vsel %vm539, %v642, %v646
      %v649 = vshrl.u32 %v484, 16
      %v651 = vshll.u32 %v484, 16
      %v653 = vrot.slane %v651, 1
      %v654 = vor.u32 %v649, %v653
      %v656 = vshll.u32 %v532, 16
      %v658 = vrot.slane %v656, 1
      %v659 = vsel %vm539, %v654, %v658
      %v661 = vshrl.u32 %v485, 16
      %v663 = vshll.u32 %v485, 16
      %v665 = vrot.slane %v663, 1
      %v666 = vor.u32 %v661, %v665
      %v668 = vshll.u32 %v533, 16
      %v670 = vrot.slane %v668, 1
      %v671 = vsel %vm539, %v666, %v670
      %v673 = vshrl.u32 %v486, 16
      %v675 = vshll.u32 %v486, 16
      %v677 = vrot.slane %v675, 1
      %v678 = vor.u32 %v673, %v677
      %v680 = vshll.u32 %v534, 16
      %v682 = vrot.slane %v680, 1
      %v683 = vsel %vm539, %v678, %v682
      %v685 = vshrl.u32 %v487, 16
      %v687 = vshll.u32 %v487, 16
      %v689 = vrot.slane %v687, 1
      %v690 = vor.u32 %v685, %v689
      %v692 = vshll.u32 %v535, 16
      %v694 = vrot.slane %v692, 1
      %v695 = vsel %vm539, %v690, %v694
      %v697 = vshrl.u32 %v488, 16
      %v699 = vshll.u32 %v488, 16
      %v701 = vrot.slane %v699, 1
      %v702 = vor.u32 %v697, %v701
      %v704 = vshll.u32 %v536, 16
      %v706 = vrot.slane %v704, 1
      %v707 = vsel %vm539, %v702, %v706
      %v709 = vshrl.u32 %v489, 16
      %v711 = vshll.u32 %v489, 16
      %v713 = vrot.slane %v711, 1
      %v714 = vor.u32 %v709, %v713
      %v716 = vshll.u32 %v537, 16
      %v718 = vrot.slane %v716, 1
      %v719 = vsel %vm539, %v714, %v718
      %v721 = vshrl.u32 %v490, 16
      %v723 = vshll.u32 %v490, 16
      %v725 = vrot.slane %v723, 1
      %v726 = vor.u32 %v721, %v725
      %v728 = vshll.u32 %v538, 16
      %v730 = vrot.slane %v728, 1
      %v731 = vsel %vm539, %v726, %v730
      %732 = vrot.lane.b32.xlu0 %v551, 4
      %v733 = vpop.permute.xlu0 %732
      %734 = vrot.lane.b32.xlu0 %v563, 4
      %v735 = vpop.permute.xlu0 %734
      %736 = vrot.lane.b32.xlu0 %v575, 4
      %v737 = vpop.permute.xlu0 %736
      %738 = vrot.lane.b32.xlu0 %v587, 4
      %v739 = vpop.permute.xlu0 %738
      %740 = vrot.lane.b32.xlu0 %v599, 4
      %v741 = vpop.permute.xlu0 %740
      %742 = vrot.lane.b32.xlu0 %v611, 4
      %v743 = vpop.permute.xlu0 %742
      %744 = vrot.lane.b32.xlu0 %v623, 4
      %v745 = vpop.permute.xlu0 %744
      %746 = vrot.lane.b32.xlu0 %v635, 4
      %v747 = vpop.permute.xlu0 %746
      %748 = vrot.lane.b32.xlu0 %v647, 4
      %v749 = vpop.permute.xlu0 %748
      %750 = vrot.lane.b32.xlu0 %v659, 4
      %v751 = vpop.permute.xlu0 %750
      %752 = vrot.lane.b32.xlu0 %v671, 4
      %v753 = vpop.permute.xlu0 %752
      %754 = vrot.lane.b32.xlu0 %v683, 4
      %v755 = vpop.permute.xlu0 %754
      %756 = vrot.lane.b32.xlu0 %v695, 4
      %v757 = vpop.permute.xlu0 %756
      %758 = vrot.lane.b32.xlu0 %v707, 4
      %v759 = vpop.permute.xlu0 %758
      %760 = vrot.lane.b32.xlu0 %v719, 4
      %v761 = vpop.permute.xlu0 %760
      %762 = vrot.lane.b32.xlu0 %v731, 4
      %v763 = vpop.permute.xlu0 %762
      %vm764 = vcmask 1046528
      %v765 = vrot.slane %v475, 1
      %v766 = vrot.slane %v523, 1
      %v767 = vsel %vm764, %v765, %v766
      %v768 = vrot.slane %v476, 1
      %v769 = vrot.slane %v524, 1
      %v770 = vsel %vm764, %v768, %v769
      %v771 = vrot.slane %v477, 1
      %v772 = vrot.slane %v525, 1
      %v773 = vsel %vm764, %v771, %v772
      %v774 = vrot.slane %v478, 1
      %v775 = vrot.slane %v526, 1
      %v776 = vsel %vm764, %v774, %v775
      %v777 = vrot.slane %v479, 1
      %v778 = vrot.slane %v527, 1
      %v779 = vsel %vm764, %v777, %v778
      %v780 = vrot.slane %v480, 1
      %v781 = vrot.slane %v528, 1
      %v782 = vsel %vm764, %v780, %v781
      %v783 = vrot.slane %v481, 1
      %v784 = vrot.slane %v529, 1
      %v785 = vsel %vm764, %v783, %v784
      %v786 = vrot.slane %v482, 1
      %v787 = vrot.slane %v530, 1
      %v788 = vsel %vm764, %v786, %v787
      %v789 = vrot.slane %v483, 1
      %v790 = vrot.slane %v531, 1
      %v791 = vsel %vm764, %v789, %v790
      %v792 = vrot.slane %v484, 1
      %v793 = vrot.slane %v532, 1
      %v794 = vsel %vm764, %v792, %v793
      %v795 = vrot.slane %v485, 1
      %v796 = vrot.slane %v533, 1
      %v797 = vsel %vm764, %v795, %v796
      %v798 = vrot.slane %v486, 1
      %v799 = vrot.slane %v534, 1
      %v800 = vsel %vm764, %v798, %v799
      %v801 = vrot.slane %v487, 1
      %v802 = vrot.slane %v535, 1
      %v803 = vsel %vm764, %v801, %v802
      %v804 = vrot.slane %v488, 1
      %v805 = vrot.slane %v536, 1
      %v806 = vsel %vm764, %v804, %v805
      %v807 = vrot.slane %v489, 1
      %v808 = vrot.slane %v537, 1
      %v809 = vsel %vm764, %v807, %v808
      %v810 = vrot.slane %v490, 1
      %v811 = vrot.slane %v538, 1
      %v812 = vsel %vm764, %v810, %v811
      %813 = vrot.lane.b32.xlu0 %v767, 8
      %v814 = vpop.permute.xlu0 %813
      %815 = vrot.lane.b32.xlu0 %v770, 8
      %v816 = vpop.permute.xlu0 %815
      %817 = vrot.lane.b32.xlu0 %v773, 8
      %v818 = vpop.permute.xlu0 %817
      %819 = vrot.lane.b32.xlu0 %v776, 8
      %v820 = vpop.permute.xlu0 %819
      %821 = vrot.lane.b32.xlu0 %v779, 8
      %v822 = vpop.permute.xlu0 %821
      %823 = vrot.lane.b32.xlu0 %v782, 8
      %v824 = vpop.permute.xlu0 %823
      %825 = vrot.lane.b32.xlu0 %v785, 8
      %v826 = vpop.permute.xlu0 %825
      %827 = vrot.lane.b32.xlu0 %v788, 8
      %v828 = vpop.permute.xlu0 %827
      %829 = vrot.lane.b32.xlu0 %v791, 8
      %v830 = vpop.permute.xlu0 %829
      %831 = vrot.lane.b32.xlu0 %v794, 8
      %v832 = vpop.permute.xlu0 %831
      %833 = vrot.lane.b32.xlu0 %v797, 8
      %v834 = vpop.permute.xlu0 %833
      %835 = vrot.lane.b32.xlu0 %v800, 8
      %v836 = vpop.permute.xlu0 %835
      %837 = vrot.lane.b32.xlu0 %v803, 8
      %v838 = vpop.permute.xlu0 %837
      %839 = vrot.lane.b32.xlu0 %v806, 8
      %v840 = vpop.permute.xlu0 %839
      %841 = vrot.lane.b32.xlu0 %v809, 8
      %v842 = vpop.permute.xlu0 %841
      %843 = vrot.lane.b32.xlu0 %v812, 8
      %v844 = vpop.permute.xlu0 %843
      %v847 = vunpack.c.l.b16 %v405
      %v848 = vunpack.c.l.b16 %v406
      %v849 = vpack.c.b16 %v848, %v847
      %850 = vrot.lane.b32.xlu0 %v476, 12
      %v851 = vpop.permute.xlu0 %850
      %852 = vrot.lane.b32.xlu0 %v477, 12
      %v853 = vpop.permute.xlu0 %852
      %854 = vrot.lane.b32.xlu0 %v478, 12
      %v855 = vpop.permute.xlu0 %854
      %856 = vrot.lane.b32.xlu0 %v479, 12
      %v857 = vpop.permute.xlu0 %856
      %858 = vrot.lane.b32.xlu0 %v480, 12
      %v859 = vpop.permute.xlu0 %858
      %860 = vrot.lane.b32.xlu0 %v481, 12
      %v861 = vpop.permute.xlu0 %860
      %862 = vrot.lane.b32.xlu0 %v482, 12
      %v863 = vpop.permute.xlu0 %862
      %864 = vrot.lane.b32.xlu0 %v483, 12
      %v865 = vpop.permute.xlu0 %864
      %866 = vrot.lane.b32.xlu0 %v484, 12
      %v867 = vpop.permute.xlu0 %866
      %868 = vrot.lane.b32.xlu0 %v485, 12
      %v869 = vpop.permute.xlu0 %868
      %870 = vrot.lane.b32.xlu0 %v486, 12
      %v871 = vpop.permute.xlu0 %870
      %872 = vrot.lane.b32.xlu0 %v487, 12
      %v873 = vpop.permute.xlu0 %872
      %874 = vrot.lane.b32.xlu0 %v488, 12
      %v875 = vpop.permute.xlu0 %874
      %876 = vrot.lane.b32.xlu0 %v489, 12
      %v877 = vpop.permute.xlu0 %876
      %878 = vrot.lane.b32.xlu0 %v490, 12
      %v879 = vpop.permute.xlu0 %878
      %880 = vrot.lane.b32.xlu0 %v849, 12
      %v881 = vpop.permute.xlu0 %880
      %v883 = vunpack.c.l.b16 %v407
      %v884 = vpack.c.b16 %v883, %v883
      %v886 = vshrl.u32 %v849, 16
      %v888 = vshll.u32 %v849, 16
      %v890 = vrot.slane %v888, 1
      %v891 = vor.u32 %v886, %v890
      %v893 = vshll.u32 %v884, 16
      %v895 = vrot.slane %v893, 1
      %v896 = vsel %vm539, %v891, %v895
      %897 = vrot.lane.b32.xlu0 %v563, 16
      %v898 = vpop.permute.xlu0 %897
      %899 = vrot.lane.b32.xlu0 %v575, 16
      %v900 = vpop.permute.xlu0 %899
      %901 = vrot.lane.b32.xlu0 %v587, 16
      %v902 = vpop.permute.xlu0 %901
      %903 = vrot.lane.b32.xlu0 %v599, 16
      %v904 = vpop.permute.xlu0 %903
      %905 = vrot.lane.b32.xlu0 %v611, 16
      %v906 = vpop.permute.xlu0 %905
      %907 = vrot.lane.b32.xlu0 %v623, 16
      %v908 = vpop.permute.xlu0 %907
      %909 = vrot.lane.b32.xlu0 %v635, 16
      %v910 = vpop.permute.xlu0 %909
      %911 = vrot.lane.b32.xlu0 %v647, 16
      %v912 = vpop.permute.xlu0 %911
      %913 = vrot.lane.b32.xlu0 %v659, 16
      %v914 = vpop.permute.xlu0 %913
      %915 = vrot.lane.b32.xlu0 %v671, 16
      %v916 = vpop.permute.xlu0 %915
      %917 = vrot.lane.b32.xlu0 %v683, 16
      %v918 = vpop.permute.xlu0 %917
      %919 = vrot.lane.b32.xlu0 %v695, 16
      %v920 = vpop.permute.xlu0 %919
      %921 = vrot.lane.b32.xlu0 %v707, 16
      %v922 = vpop.permute.xlu0 %921
      %923 = vrot.lane.b32.xlu0 %v719, 16
      %v924 = vpop.permute.xlu0 %923
      %925 = vrot.lane.b32.xlu0 %v731, 16
      %v926 = vpop.permute.xlu0 %925
      %927 = vrot.lane.b32.xlu0 %v896, 16
      %v928 = vpop.permute.xlu0 %927
      %v929 = vrot.slane %v849, 1
      %v930 = vrot.slane %v884, 1
      %v931 = vsel %vm764, %v929, %v930
      %932 = vrot.lane.b32.xlu0 %v770, 20
      %v933 = vpop.permute.xlu0 %932
      %934 = vrot.lane.b32.xlu0 %v773, 20
      %v935 = vpop.permute.xlu0 %934
      %936 = vrot.lane.b32.xlu0 %v776, 20
      %v937 = vpop.permute.xlu0 %936
      %938 = vrot.lane.b32.xlu0 %v779, 20
      %v939 = vpop.permute.xlu0 %938
      %940 = vrot.lane.b32.xlu0 %v782, 20
      %v941 = vpop.permute.xlu0 %940
      %942 = vrot.lane.b32.xlu0 %v785, 20
      %v943 = vpop.permute.xlu0 %942
      %944 = vrot.lane.b32.xlu0 %v788, 20
      %v945 = vpop.permute.xlu0 %944
      %946 = vrot.lane.b32.xlu0 %v791, 20
      %v947 = vpop.permute.xlu0 %946
      %948 = vrot.lane.b32.xlu0 %v794, 20
      %v949 = vpop.permute.xlu0 %948
      %950 = vrot.lane.b32.xlu0 %v797, 20
      %v951 = vpop.permute.xlu0 %950
      %952 = vrot.lane.b32.xlu0 %v800, 20
      %v953 = vpop.permute.xlu0 %952
      %954 = vrot.lane.b32.xlu0 %v803, 20
      %v955 = vpop.permute.xlu0 %954
      %956 = vrot.lane.b32.xlu0 %v806, 20
      %v957 = vpop.permute.xlu0 %956
      %958 = vrot.lane.b32.xlu0 %v809, 20
      %v959 = vpop.permute.xlu0 %958
      %960 = vrot.lane.b32.xlu0 %v812, 20
      %v961 = vpop.permute.xlu0 %960
      %962 = vrot.lane.b32.xlu0 %v931, 20
      %v963 = vpop.permute.xlu0 %962
      %v966 = vunpack.c.l.b16 %v408
      %v967 = vunpack.c.l.b16 %v409
      %v968 = vpack.c.b16 %v967, %v966
      %969 = vrot.lane.b32.xlu0 %v477, 24
      %v970 = vpop.permute.xlu0 %969
      %971 = vrot.lane.b32.xlu0 %v478, 24
      %v972 = vpop.permute.xlu0 %971
      %973 = vrot.lane.b32.xlu0 %v479, 24
      %v974 = vpop.permute.xlu0 %973
      %975 = vrot.lane.b32.xlu0 %v480, 24
      %v976 = vpop.permute.xlu0 %975
      %977 = vrot.lane.b32.xlu0 %v481, 24
      %v978 = vpop.permute.xlu0 %977
      %979 = vrot.lane.b32.xlu0 %v482, 24
      %v980 = vpop.permute.xlu0 %979
      %981 = vrot.lane.b32.xlu0 %v483, 24
      %v982 = vpop.permute.xlu0 %981
      %983 = vrot.lane.b32.xlu0 %v484, 24
      %v984 = vpop.permute.xlu0 %983
      %985 = vrot.lane.b32.xlu0 %v485, 24
      %v986 = vpop.permute.xlu0 %985
      %987 = vrot.lane.b32.xlu0 %v486, 24
      %v988 = vpop.permute.xlu0 %987
      %989 = vrot.lane.b32.xlu0 %v487, 24
      %v990 = vpop.permute.xlu0 %989
      %991 = vrot.lane.b32.xlu0 %v488, 24
      %v992 = vpop.permute.xlu0 %991
      %993 = vrot.lane.b32.xlu0 %v489, 24
      %v994 = vpop.permute.xlu0 %993
      %995 = vrot.lane.b32.xlu0 %v490, 24
      %v996 = vpop.permute.xlu0 %995
      %997 = vrot.lane.b32.xlu0 %v849, 24
      %v998 = vpop.permute.xlu0 %997
      %999 = vrot.lane.b32.xlu0 %v968, 24
      %v1000 = vpop.permute.xlu0 %999
      %v1002 = vunpack.c.l.b16 %v410
      %v1003 = vpack.c.b16 %v1002, %v1002
      %v1005 = vshrl.u32 %v968, 16
      %v1007 = vshll.u32 %v968, 16
      %v1009 = vrot.slane %v1007, 1
      %v1010 = vor.u32 %v1005, %v1009
      %v1012 = vshll.u32 %v1003, 16
      %v1014 = vrot.slane %v1012, 1
      %v1015 = vsel %vm539, %v1010, %v1014
      %1016 = vrot.lane.b32.xlu0 %v575, 28
      %v1017 = vpop.permute.xlu0 %1016
      %1018 = vrot.lane.b32.xlu0 %v587, 28
      %v1019 = vpop.permute.xlu0 %1018
      %1020 = vrot.lane.b32.xlu0 %v599, 28
      %v1021 = vpop.permute.xlu0 %1020
      %1022 = vrot.lane.b32.xlu0 %v611, 28
      %v1023 = vpop.permute.xlu0 %1022
      %1024 = vrot.lane.b32.xlu0 %v623, 28
      %v1025 = vpop.permute.xlu0 %1024
      %1026 = vrot.lane.b32.xlu0 %v635, 28
      %v1027 = vpop.permute.xlu0 %1026
      %1028 = vrot.lane.b32.xlu0 %v647, 28
      %v1029 = vpop.permute.xlu0 %1028
      %1030 = vrot.lane.b32.xlu0 %v659, 28
      %v1031 = vpop.permute.xlu0 %1030
      %1032 = vrot.lane.b32.xlu0 %v671, 28
      %v1033 = vpop.permute.xlu0 %1032
      %1034 = vrot.lane.b32.xlu0 %v683, 28
      %v1035 = vpop.permute.xlu0 %1034
      %1036 = vrot.lane.b32.xlu0 %v695, 28
      %v1037 = vpop.permute.xlu0 %1036
      %1038 = vrot.lane.b32.xlu0 %v707, 28
      %v1039 = vpop.permute.xlu0 %1038
      %1040 = vrot.lane.b32.xlu0 %v719, 28
      %v1041 = vpop.permute.xlu0 %1040
      %1042 = vrot.lane.b32.xlu0 %v731, 28
      %v1043 = vpop.permute.xlu0 %1042
      %1044 = vrot.lane.b32.xlu0 %v896, 28
      %v1045 = vpop.permute.xlu0 %1044
      %1046 = vrot.lane.b32.xlu0 %v1015, 28
      %v1047 = vpop.permute.xlu0 %1046
      %v1048 = vrot.slane %v968, 1
      %v1049 = vrot.slane %v1003, 1
      %v1050 = vsel %vm764, %v1048, %v1049
      %1051 = vrot.lane.b32.xlu0 %v773, 32
      %v1052 = vpop.permute.xlu0 %1051
      %1053 = vrot.lane.b32.xlu0 %v776, 32
      %v1054 = vpop.permute.xlu0 %1053
      %1055 = vrot.lane.b32.xlu0 %v779, 32
      %v1056 = vpop.permute.xlu0 %1055
      %1057 = vrot.lane.b32.xlu0 %v782, 32
      %v1058 = vpop.permute.xlu0 %1057
      %1059 = vrot.lane.b32.xlu0 %v785, 32
      %v1060 = vpop.permute.xlu0 %1059
      %1061 = vrot.lane.b32.xlu0 %v788, 32
      %v1062 = vpop.permute.xlu0 %1061
      %1063 = vrot.lane.b32.xlu0 %v791, 32
      %v1064 = vpop.permute.xlu0 %1063
      %1065 = vrot.lane.b32.xlu0 %v794, 32
      %v1066 = vpop.permute.xlu0 %1065
      %1067 = vrot.lane.b32.xlu0 %v797, 32
      %v1068 = vpop.permute.xlu0 %1067
      %1069 = vrot.lane.b32.xlu0 %v800, 32
      %v1070 = vpop.permute.xlu0 %1069
      %1071 = vrot.lane.b32.xlu0 %v803, 32
      %v1072 = vpop.permute.xlu0 %1071
      %1073 = vrot.lane.b32.xlu0 %v806, 32
      %v1074 = vpop.permute.xlu0 %1073
      %1075 = vrot.lane.b32.xlu0 %v809, 32
      %v1076 = vpop.permute.xlu0 %1075
      %1077 = vrot.lane.b32.xlu0 %v812, 32
      %v1078 = vpop.permute.xlu0 %1077
      %1079 = vrot.lane.b32.xlu0 %v931, 32
      %v1080 = vpop.permute.xlu0 %1079
      %1081 = vrot.lane.b32.xlu0 %v1050, 32
      %v1082 = vpop.permute.xlu0 %1081
      %vm1083 = vcmask 31744
      %v1085 = vsel %vm1083, %v475, %v733
      %v1087 = vsel %vm1083, %v476, %v735
      %v1089 = vsel %vm1083, %v477, %v737
      %v1091 = vsel %vm1083, %v478, %v739
      %v1093 = vsel %vm1083, %v479, %v741
      %v1095 = vsel %vm1083, %v480, %v743
      %v1097 = vsel %vm1083, %v481, %v745
      %v1099 = vsel %vm1083, %v482, %v747
      %v1101 = vsel %vm1083, %v483, %v749
      %v1103 = vsel %vm1083, %v484, %v751
      %v1105 = vsel %vm1083, %v485, %v753
      %v1107 = vsel %vm1083, %v486, %v755
      %v1109 = vsel %vm1083, %v487, %v757
      %v1111 = vsel %vm1083, %v488, %v759
      %v1113 = vsel %vm1083, %v489, %v761
      %v1115 = vsel %vm1083, %v490, %v763
      %vm1116 = vcmask 64512
      %v1118 = vsel %vm1116, %v1085, %v814
      %v1120 = vsel %vm1116, %v1087, %v816
      %v1122 = vsel %vm1116, %v1089, %v818
      %v1124 = vsel %vm1116, %v1091, %v820
      %v1126 = vsel %vm1116, %v1093, %v822
      %v1128 = vsel %vm1116, %v1095, %v824
      %v1130 = vsel %vm1116, %v1097, %v826
      %v1132 = vsel %vm1116, %v1099, %v828
      %v1134 = vsel %vm1116, %v1101, %v830
      %v1136 = vsel %vm1116, %v1103, %v832
      %v1138 = vsel %vm1116, %v1105, %v834
      %v1140 = vsel %vm1116, %v1107, %v836
      %v1142 = vsel %vm1116, %v1109, %v838
      %v1144 = vsel %vm1116, %v1111, %v840
      %v1146 = vsel %vm1116, %v1113, %v842
      %v1148 = vsel %vm1116, %v1115, %v844
      %vm1149 = vcmask 97280
      %v1151 = vsel %vm1149, %v1118, %v851
      %v1153 = vsel %vm1149, %v1120, %v853
      %v1155 = vsel %vm1149, %v1122, %v855
      %v1157 = vsel %vm1149, %v1124, %v857
      %v1159 = vsel %vm1149, %v1126, %v859
      %v1161 = vsel %vm1149, %v1128, %v861
      %v1163 = vsel %vm1149, %v1130, %v863
      %v1165 = vsel %vm1149, %v1132, %v865
      %v1167 = vsel %vm1149, %v1134, %v867
      %v1169 = vsel %vm1149, %v1136, %v869
      %v1171 = vsel %vm1149, %v1138, %v871
      %v1173 = vsel %vm1149, %v1140, %v873
      %v1175 = vsel %vm1149, %v1142, %v875
      %v1177 = vsel %vm1149, %v1144, %v877
      %v1179 = vsel %vm1149, %v1146, %v879
      %v1181 = vsel %vm1149, %v1148, %v881
      %vm1182 = vcmask 130048
      %v1184 = vsel %vm1182, %v1151, %v898
      %v1186 = vsel %vm1182, %v1153, %v900
      %v1188 = vsel %vm1182, %v1155, %v902
      %v1190 = vsel %vm1182, %v1157, %v904
      %v1192 = vsel %vm1182, %v1159, %v906
      %v1194 = vsel %vm1182, %v1161, %v908
      %v1196 = vsel %vm1182, %v1163, %v910
      %v1198 = vsel %vm1182, %v1165, %v912
      %v1200 = vsel %vm1182, %v1167, %v914
      %v1202 = vsel %vm1182, %v1169, %v916
      %v1204 = vsel %vm1182, %v1171, %v918
      %v1206 = vsel %vm1182, %v1173, %v920
      %v1208 = vsel %vm1182, %v1175, %v922
      %v1210 = vsel %vm1182, %v1177, %v924
      %v1212 = vsel %vm1182, %v1179, %v926
      %v1214 = vsel %vm1182, %v1181, %v928
      %vm1215 = vcmask 162816
      %v1217 = vsel %vm1215, %v1184, %v933
      %v1219 = vsel %vm1215, %v1186, %v935
      %v1221 = vsel %vm1215, %v1188, %v937
      %v1223 = vsel %vm1215, %v1190, %v939
      %v1225 = vsel %vm1215, %v1192, %v941
      %v1227 = vsel %vm1215, %v1194, %v943
      %v1229 = vsel %vm1215, %v1196, %v945
      %v1231 = vsel %vm1215, %v1198, %v947
      %v1233 = vsel %vm1215, %v1200, %v949
      %v1235 = vsel %vm1215, %v1202, %v951
      %v1237 = vsel %vm1215, %v1204, %v953
      %v1239 = vsel %vm1215, %v1206, %v955
      %v1241 = vsel %vm1215, %v1208, %v957
      %v1243 = vsel %vm1215, %v1210, %v959
      %v1245 = vsel %vm1215, %v1212, %v961
      %v1247 = vsel %vm1215, %v1214, %v963
      %vm1248 = vcmask 195584
      %v1250 = vsel %vm1248, %v1217, %v970
      %v1252 = vsel %vm1248, %v1219, %v972
      %v1254 = vsel %vm1248, %v1221, %v974
      %v1256 = vsel %vm1248, %v1223, %v976
      %v1258 = vsel %vm1248, %v1225, %v978
      %v1260 = vsel %vm1248, %v1227, %v980
      %v1262 = vsel %vm1248, %v1229, %v982
      %v1264 = vsel %vm1248, %v1231, %v984
      %v1266 = vsel %vm1248, %v1233, %v986
      %v1268 = vsel %vm1248, %v1235, %v988
      %v1270 = vsel %vm1248, %v1237, %v990
      %v1272 = vsel %vm1248, %v1239, %v992
      %v1274 = vsel %vm1248, %v1241, %v994
      %v1276 = vsel %vm1248, %v1243, %v996
      %v1278 = vsel %vm1248, %v1245, %v998
      %v1280 = vsel %vm1248, %v1247, %v1000
      %vm1281 = vcmask 228352
      %v1283 = vsel %vm1281, %v1250, %v1017
      %v1285 = vsel %vm1281, %v1252, %v1019
      %v1287 = vsel %vm1281, %v1254, %v1021
      %v1289 = vsel %vm1281, %v1256, %v1023
      %v1291 = vsel %vm1281, %v1258, %v1025
      %v1293 = vsel %vm1281, %v1260, %v1027
      %v1295 = vsel %vm1281, %v1262, %v1029
      %v1297 = vsel %vm1281, %v1264, %v1031
      %v1299 = vsel %vm1281, %v1266, %v1033
      %v1301 = vsel %vm1281, %v1268, %v1035
      %v1303 = vsel %vm1281, %v1270, %v1037
      %v1305 = vsel %vm1281, %v1272, %v1039
      %v1307 = vsel %vm1281, %v1274, %v1041
      %v1309 = vsel %vm1281, %v1276, %v1043
      %v1311 = vsel %vm1281, %v1278, %v1045
      %v1313 = vsel %vm1281, %v1280, %v1047
      %vm1314 = vcmask 261120
      %v1316 = vsel %vm1314, %v1283, %v1052
      %v1318 = vsel %vm1314, %v1285, %v1054
      %v1320 = vsel %vm1314, %v1287, %v1056
      %v1322 = vsel %vm1314, %v1289, %v1058
      %v1324 = vsel %vm1314, %v1291, %v1060
      %v1326 = vsel %vm1314, %v1293, %v1062
      %v1328 = vsel %vm1314, %v1295, %v1064
      %v1330 = vsel %vm1314, %v1297, %v1066
      %v1332 = vsel %vm1314, %v1299, %v1068
      %v1334 = vsel %vm1314, %v1301, %v1070
      %v1336 = vsel %vm1314, %v1303, %v1072
      %v1338 = vsel %vm1314, %v1305, %v1074
      %v1340 = vsel %vm1314, %v1307, %v1076
      %v1342 = vsel %vm1314, %v1309, %v1078
      %v1344 = vsel %vm1314, %v1311, %v1080
      %v1346 = vsel %vm1314, %v1313, %v1082
      %v1347 = vld [vmem:[%s341] sm:$0xf]
      %v1348 = vld [vmem:[%s341 + $0x4] sm:$0xf]
      %v1349 = vld [vmem:[%s341 + $0x8] sm:$0xf]
      %v1350 = vld [vmem:[%s341 + $0xc] sm:$0xf]
      %v1351 = vld [vmem:[%s341 + $0x10] sm:$0x3]
      %v1357 = vunpack.c.l.b16 %v1347
      %v1358 = vunpack.c.l.b16 %v1348
      %v1359 = vunpack.c.l.b16 %v1349
      %v1360 = vunpack.c.l.b16 %v1350
      %v1361 = vunpack.c.l.b16 %v1351
      %v1362 = vpack.c.b16 %v1358, %v1357
      %v1363 = vpack.c.b16 %v1360, %v1359
      %v1364 = vpack.c.b16 %v1361, %v1361
      %vm1367 = vcmask 293888
      %v1368 = vsel %vm1367, %v1316, 0
      %v1370 = vsel %vm1367, %v1318, 0
      %v1372 = vsel %vm1367, %v1320, 0
      %v1374 = vsel %vm1367, %v1322, 0
      %v1376 = vsel %vm1367, %v1324, 0
      %v1378 = vsel %vm1367, %v1326, 0
      %v1380 = vsel %vm1367, %v1328, 0
      %v1382 = vsel %vm1367, %v1330, 0
      %v1384 = vsel %vm1367, %v1332, 0
      %v1386 = vsel %vm1367, %v1334, 0
      %v1388 = vsel %vm1367, %v1336, 0
      %v1390 = vsel %vm1367, %v1338, 0
      %v1392 = vsel %vm1367, %v1340, 0
      %v1394 = vsel %vm1367, %v1342, 0
      %v1396 = vsel %vm1367, %v1344, 0
      %v1398 = vsel %vm1367, %v1346, 0
      %vm1400 = vcmask 1041408
      %v1402 = vsel %vm1400, %v1364, 0
      %1404 = vmatpush.bf16.msra.mxu0 0
      %1405 = vmatpush.bf16.msra.mxu0 0
      %1406 = vmatpush.bf16.msra.mxu0 0
      %1407 = vmatpush.bf16.msra.mxu0 0
      %1408 = vmatpush.bf16.msra.mxu0 0
      %1409 = vmatpush.bf16.msra.mxu0 %v1402
      %1410 = vmatpush.bf16.msra.mxu0 %v1363
      %1411 = vmatpush.bf16.msra.mxu0 %v1362
      %1412 = vmatmul.bf16.gmra.mxu0 %v1368
      %v1413 = vpop.f32.mrf.mxu0
      %v1414 = vadd.f32 0.0, %v1413
      %v1415 = vpop.f32.mrf.mxu0
      %v1416 = vadd.f32 0.0, %v1415
      %1417 = vmatmul.bf16.gmra.mxu0 %v1370
      %v1418 = vpop.f32.mrf.mxu0
      %v1419 = vadd.f32 0.0, %v1418
      %v1420 = vpop.f32.mrf.mxu0
      %v1421 = vadd.f32 0.0, %v1420
      %1422 = vmatmul.bf16.gmra.mxu0 %v1372
      %v1423 = vpop.f32.mrf.mxu0
      %v1424 = vadd.f32 0.0, %v1423
      %v1425 = vpop.f32.mrf.mxu0
      %v1426 = vadd.f32 0.0, %v1425
      %1427 = vmatmul.bf16.gmra.mxu0 %v1374
      %v1428 = vpop.f32.mrf.mxu0
      %v1429 = vadd.f32 0.0, %v1428
      %v1430 = vpop.f32.mrf.mxu0
      %v1431 = vadd.f32 0.0, %v1430
      %1432 = vmatmul.bf16.gmra.mxu0 %v1376
      %v1433 = vpop.f32.mrf.mxu0
      %v1434 = vadd.f32 0.0, %v1433
      %v1435 = vpop.f32.mrf.mxu0
      %v1436 = vadd.f32 0.0, %v1435
      %1437 = vmatmul.bf16.gmra.mxu0 %v1378
      %v1438 = vpop.f32.mrf.mxu0
      %v1439 = vadd.f32 0.0, %v1438
      %v1440 = vpop.f32.mrf.mxu0
      %v1441 = vadd.f32 0.0, %v1440
      %1442 = vmatmul.bf16.gmra.mxu0 %v1380
      %v1443 = vpop.f32.mrf.mxu0
      %v1444 = vadd.f32 0.0, %v1443
      %v1445 = vpop.f32.mrf.mxu0
      %v1446 = vadd.f32 0.0, %v1445
      %1447 = vmatmul.bf16.gmra.mxu0 %v1382
      %v1448 = vpop.f32.mrf.mxu0
      %v1449 = vadd.f32 0.0, %v1448
      %v1450 = vpop.f32.mrf.mxu0
      %v1451 = vadd.f32 0.0, %v1450
      %1452 = vmatmul.bf16.gmra.mxu0 %v1384
      %v1453 = vpop.f32.mrf.mxu0
      %v1454 = vadd.f32 0.0, %v1453
      %v1455 = vpop.f32.mrf.mxu0
      %v1456 = vadd.f32 0.0, %v1455
      %1457 = vmatmul.bf16.gmra.mxu0 %v1386
      %v1458 = vpop.f32.mrf.mxu0
      %v1459 = vadd.f32 0.0, %v1458
      %v1460 = vpop.f32.mrf.mxu0
      %v1461 = vadd.f32 0.0, %v1460
      %1462 = vmatmul.bf16.gmra.mxu0 %v1388
      %v1463 = vpop.f32.mrf.mxu0
      %v1464 = vadd.f32 0.0, %v1463
      %v1465 = vpop.f32.mrf.mxu0
      %v1466 = vadd.f32 0.0, %v1465
      %1467 = vmatmul.bf16.gmra.mxu0 %v1390
      %v1468 = vpop.f32.mrf.mxu0
      %v1469 = vadd.f32 0.0, %v1468
      %v1470 = vpop.f32.mrf.mxu0
      %v1471 = vadd.f32 0.0, %v1470
      %1472 = vmatmul.bf16.gmra.mxu0 %v1392
      %v1473 = vpop.f32.mrf.mxu0
      %v1474 = vadd.f32 0.0, %v1473
      %v1475 = vpop.f32.mrf.mxu0
      %v1476 = vadd.f32 0.0, %v1475
      %1477 = vmatmul.bf16.gmra.mxu0 %v1394
      %v1478 = vpop.f32.mrf.mxu0
      %v1479 = vadd.f32 0.0, %v1478
      %v1480 = vpop.f32.mrf.mxu0
      %v1481 = vadd.f32 0.0, %v1480
      %1482 = vmatmul.bf16.gmra.mxu0 %v1396
      %v1483 = vpop.f32.mrf.mxu0
      %v1484 = vadd.f32 0.0, %v1483
      %v1485 = vpop.f32.mrf.mxu0
      %v1486 = vadd.f32 0.0, %v1485
      %1487 = vmatmul.bf16.gmra.mxu0 %v1398
      %v1488 = vpop.f32.mrf.mxu0
      %v1489 = vadd.f32 0.0, %v1488
      %v1490 = vpop.f32.mrf.mxu0
      %v1491 = vadd.f32 0.0, %v1490
      %1492 = vdwg.mxu0
      %1493 = vst.msk [vmem:[%s354] sm:$0xff] %vm1116, %v1414
      %1494 = vst.msk [vmem:[%s354 + $0x8] sm:$0xff] %vm1116, %v1416
      %1495 = vst.msk [vmem:[%s354 + $0x10] sm:$0xff] %vm1116, %v1419
      %1496 = vst.msk [vmem:[%s354 + $0x18] sm:$0xff] %vm1116, %v1421
      %1497 = vst.msk [vmem:[%s354 + $0x20] sm:$0xff] %vm1116, %v1424
      %1498 = vst.msk [vmem:[%s354 + $0x28] sm:$0xff] %vm1116, %v1426
      %1499 = vst.msk [vmem:[%s354 + $0x30] sm:$0xff] %vm1116, %v1429
      %1500 = vst.msk [vmem:[%s354 + $0x38] sm:$0xff] %vm1116, %v1431
      %1501 = vst.msk [vmem:[%s354 + $0x40] sm:$0xff] %vm1116, %v1434
      %1502 = vst.msk [vmem:[%s354 + $0x48] sm:$0xff] %vm1116, %v1436
      %1503 = vst.msk [vmem:[%s354 + $0x50] sm:$0xff] %vm1116, %v1439
      %1504 = vst.msk [vmem:[%s354 + $0x58] sm:$0xff] %vm1116, %v1441
      %1505 = vst.msk [vmem:[%s354 + $0x60] sm:$0xff] %vm1116, %v1444
      %1506 = vst.msk [vmem:[%s354 + $0x68] sm:$0xff] %vm1116, %v1446
      %1507 = vst.msk [vmem:[%s354 + $0x70] sm:$0xff] %vm1116, %v1449
      %1508 = vst.msk [vmem:[%s354 + $0x78] sm:$0xff] %vm1116, %v1451
      %1509 = vst.msk [vmem:[%s354 + $0x80] sm:$0xff] %vm1116, %v1454
      %1510 = vst.msk [vmem:[%s354 + $0x88] sm:$0xff] %vm1116, %v1456
      %1511 = vst.msk [vmem:[%s354 + $0x90] sm:$0xff] %vm1116, %v1459
      %1512 = vst.msk [vmem:[%s354 + $0x98] sm:$0xff] %vm1116, %v1461
      %1513 = vst.msk [vmem:[%s354 + $0xa0] sm:$0xff] %vm1116, %v1464
      %1514 = vst.msk [vmem:[%s354 + $0xa8] sm:$0xff] %vm1116, %v1466
      %1515 = vst.msk [vmem:[%s354 + $0xb0] sm:$0xff] %vm1116, %v1469
      %1516 = vst.msk [vmem:[%s354 + $0xb8] sm:$0xff] %vm1116, %v1471
      %1517 = vst.msk [vmem:[%s354 + $0xc0] sm:$0xff] %vm1116, %v1474
      %1518 = vst.msk [vmem:[%s354 + $0xc8] sm:$0xff] %vm1116, %v1476
      %1519 = vst.msk [vmem:[%s354 + $0xd0] sm:$0xff] %vm1116, %v1479
      %1520 = vst.msk [vmem:[%s354 + $0xd8] sm:$0xff] %vm1116, %v1481
      %1521 = vst.msk [vmem:[%s354 + $0xe0] sm:$0xff] %vm1116, %v1484
      %1522 = vst.msk [vmem:[%s354 + $0xe8] sm:$0xff] %vm1116, %v1486
      %1523 = vst.msk [vmem:[%s354 + $0xf0] sm:$0xff] %vm1116, %v1489
      %1524 = vst.msk [vmem:[%s354 + $0xf8] sm:$0xff] %vm1116, %v1491
      %s1525 = smul.u32 32, %s21
      %p1526 = scmp.lt.s32.totalorder %s19, 1
      %s1527 = scalar_select %p1526, %s19, 1
      %p1528 = scmp.lt.s32.totalorder %s20, 0
      %s1529 = scalar_select %p1528, %s20, 0
      %p1530 = scmp.lt.s32.totalorder %s1525, 31
      %s1531 = scalar_select %p1530, %s1525, 31
      %s1532 = smul.addr %s1529, 32
      %s1533 = sadd.s32 %s1531, %s1532
      %s1534 = smul.addr %s1527, 32
      %s1535 = sadd.s32 %s1533, %s1534
      %s1536 = smul.addr %s1535, 8
      %s1537 = scalar_lea.vmem %s3, %s1536
      // Predicated region
      $region33: #{repconv_forward.3} parent=31 // pred_check
        %p1538 = pneg %p145
      $region34: #{repconv_forward.3} parent=31 // pred_check_branch
        %1540 = sbr.rel (%p1538) target = $region36
      $region35: #{repconv_forward.3} parent=31 // pred_region
        %s1541 = smul.u32 32, %s21
      $region36: #{repconv_forward.3} parent=31 // pred_fallthru
        _
    $region32: #{repconv_forward.3} parent=5 // pred_fallthru
      _
    %p1542 = scmp.le.s32.totalorder 2, %s9
    // Predicated region
    $region37: #{repconv_forward.3} parent=5 // pred_check
      %p1543 = pneg %p1542
    $region38: #{repconv_forward.3} parent=5 // pred_check_branch
      %1545 = sbr.rel (%p1543) target = $region40
    $region39: #{repconv_forward.3} parent=5 // pred_region
      %s1546 = ssub.s32 %s9, 2
      // Predicated region
      $region41: #{repconv_forward.3} parent=39 // pred_check
        %p1547 = pneg %p151
      $region42: #{repconv_forward.3} parent=39 // pred_check_branch
        %1549 = sbr.rel (%p1547) target = $region44
      $region43: #{repconv_forward.3} parent=39 // pred_region
        %s1550 = smul.u32 32, %s24
        %p1551 = scmp.lt.s32.totalorder %s22, 1
        %s1552 = scalar_select %p1551, %s22, 1
        %p1553 = scmp.lt.s32.totalorder %s23, 0
        %s1554 = scalar_select %p1553, %s23, 0
        %p1555 = scmp.lt.s32.totalorder %s1550, 31
        %s1556 = scalar_select %p1555, %s1550, 31
        %s1557 = smul.addr %s1554, 32
        %s1558 = sadd.s32 %s1556, %s1557
        %s1559 = smul.addr %s1552, 32
        %s1560 = sadd.s32 %s1558, %s1559
        %s1561 = smul.addr %s1560, 8
        %s1562 = scalar_lea.vmem %s3, %s1561
      $region44: #{repconv_forward.3} parent=39 // pred_fallthru
        _
    $region40: #{repconv_forward.3} parent=5 // pred_fallthru
      _
  $region6: #{repconv_forward.3} parent=0 // loop_footer
    %s13 = sadd.s32 1, %s9
  $region7: #{repconv_forward.3} parent=0 // loop_footer_branch
    %8 = sbr.rel target = $region3
  $region8: #{repconv_forward.3} parent=0 // loop_exit
    _

</llo_original>
